<compile_context>
chip_gen: v7x
topology: tpu7x:2x2x1
jax: 0.10.0
libtpu: 0.0.40
codegen_flags: <defaults>
</compile_context>

<pallas_src>
import functools

import jax
import jax.numpy as jnp
from jax.experimental import pallas as pl
from jax.experimental.pallas import tpu as pltpu

NEG_INF = jnp.float32(-1e30)   # safe stand-in for -inf in masked softmax
LN_EPS = 1e-5


# ----------------------------- Pallas kernels --------------------------------

def _mha_block_kernel(*refs, num_heads, scale, eps, has_am, has_kpm, same_qk):
    """Fused: QKV proj -> multi-head attention -> out proj -> +residual -> LayerNorm.

    One grid step = one batch element (all heads processed together).
    """
    it = iter(refs)
    q_src_ref = next(it)                       # (1, T, D) f32
    k_src_ref = None if same_qk else next(it)  # (1, S, D) f32
    v_src_ref = next(it)                       # (1, S, D) f32
    am_ref = next(it) if has_am else None      # (T, S)  additive f32
    kpm_ref = next(it) if has_kpm else None    # (1, 1, S) additive f32
    wqkv_ref = next(it)                        # (D, 3D) bf16  = [Wq.T | Wk.T | Wv.T]
    bqkv = next(it)[...]                       # (1, 3D) f32
    wo_ref = next(it)                          # (D, D)  bf16
    bo = next(it)[...]                         # (1, D)  f32
    res = next(it)[0]                          # (T, D)  f32   residual (pre-attention input)
    g = next(it)[...]                          # (1, D)  f32   LN gamma
    beta = next(it)[...]                       # (1, D)  f32   LN beta
    o_ref = next(it)                           # (1, T, D)

    bf = jnp.bfloat16
    f32 = jnp.float32

    q_src = q_src_ref[0]                       # (T, D)
    v_src = v_src_ref[0]                       # (S, D)
    T, D = q_src.shape
    H = num_heads
    dh = D // H

    # ---- packed input projections (bf16 MXU operands, f32 accumulation) ----
    if same_qk:
        # q and k share the same source -> single matmul against [Wq|Wk]
        qk = jnp.dot(q_src.astype(bf), wqkv_ref[:, : 2 * D],
                     preferred_element_type=f32) + bqkv[:, : 2 * D]
        qp, kp = qk[:, :D], qk[:, D:]
    else:
        k_src = k_src_ref[0]
        qp = jnp.dot(q_src.astype(bf), wqkv_ref[:, :D],
                     preferred_element_type=f32) + bqkv[:, :D]
        kp = jnp.dot(k_src.astype(bf), wqkv_ref[:, D:2 * D],
                     preferred_element_type=f32) + bqkv[:, D:2 * D]
    vp = jnp.dot(v_src.astype(bf), wqkv_ref[:, 2 * D:],
                 preferred_element_type=f32) + bqkv[:, 2 * D:]

    # ---- additive attention bias built in-kernel from small mask inputs ----
    bias = None
    if has_am:
        bias = am_ref[...]                     # (T, S)
    if has_kpm:
        kb = kpm_ref[0]                        # (1, S) -> broadcasts over T
        bias = kb if bias is None else bias + kb

    # ---- per-head attention; out-projection folded into the head loop so no
    #      in-kernel concatenate is needed: out = sum_h (P_h V_h) Wo[h] ----
    dn = (((1,), (1,)), ((), ()))              # contract last dims: q @ k^T
    acc = jnp.zeros((T, D), f32)
    for h in range(H):
        lo = h * dh
        qh = (qp[:, lo:lo + dh] * scale).astype(bf)    # (T, dh)
        kh = kp[:, lo:lo + dh].astype(bf)              # (S, dh)
        vh = vp[:, lo:lo + dh].astype(bf)              # (S, dh)
        s = jax.lax.dot_general(qh, kh, dimension_numbers=dn,
                                preferred_element_type=f32)      # (T, S)
        if bias is not None:
            s = s + bias
        m = jnp.max(s, axis=-1, keepdims=True)
        p = jnp.exp(s - m)
        l = jnp.sum(p, axis=-1, keepdims=True)
        p = p * pl.reciprocal(l, approx=True)
        oh = jnp.dot(p.astype(bf), vh, preferred_element_type=f32)          # (T, dh)
        acc = acc + jnp.dot(oh.astype(bf), wo_ref[lo:lo + dh, :],
                            preferred_element_type=f32)                     # (T, D)

    # ---- residual add + LayerNorm (f32) ----
    z = res + acc + bo
    mean = jnp.mean(z, axis=-1, keepdims=True)
    zc = z - mean
    var = jnp.mean(zc * zc, axis=-1, keepdims=True)
    o_ref[0] = (zc * jax.lax.rsqrt(var + eps) * g + beta).astype(o_ref.dtype)


def _ffn_ln_kernel(x_ref, w1_ref, b1_ref, w2_ref, b2_ref, g_ref, beta_ref, o_ref, *, eps):
    """Fused: linear1 -> ReLU -> linear2 -> +residual(x) -> LayerNorm, per row tile."""
    bf = jnp.bfloat16
    f32 = jnp.float32
    x = x_ref[...]                                                 # (TM, D) f32
    h = jnp.dot(x.astype(bf), w1_ref[...], preferred_element_type=f32) + b1_ref[...]
    h = jnp.maximum(h, 0.0)
    y = jnp.dot(h.astype(bf), w2_ref[...], preferred_element_type=f32) + b2_ref[...]
    z = x + y
    mean = jnp.mean(z, axis=-1, keepdims=True)
    zc = z - mean
    var = jnp.mean(zc * zc, axis=-1, keepdims=True)
    o_ref[...] = (zc * jax.lax.rsqrt(var + eps) * g_ref[...] + beta_ref[...]).astype(o_ref.dtype)


# ----------------------------- Pallas wrappers --------------------------------

def fused_mha_block(q_src, k_src, v_src, residual, attn_p, ln_g, ln_b,
                    num_heads, attn_mask=None, key_padding_mask=None):
    """torch.nn.MultiheadAttention semantics + residual + LayerNorm, batch-first.

    q_src/k_src/v_src/residual: (B, L, D) f32 (positions already added).
    """
    B, T, D = q_src.shape
    S = v_src.shape[1]
    H = num_heads
    dh = D // H
    same_qk = k_src is q_src
    has_am = attn_mask is not None
    has_kpm = key_padding_mask is not None

    # torch in_proj_weight is (3D, D) = [Wq;Wk;Wv] (out,in); transpose packs columns.
    wqkv = attn_p["in_proj_w"].T.astype(jnp.bfloat16)               # (D, 3D)
    bqkv = attn_p["in_proj_b"].reshape(1, 3 * D).astype(jnp.float32)
    wo = attn_p["out_w"].T.astype(jnp.bfloat16)                     # (D, D)
    bo = attn_p["out_b"].reshape(1, D).astype(jnp.float32)

    operands = [q_src]
    in_specs = [pl.BlockSpec((1, T, D), lambda b: (b, 0, 0))]
    if not same_qk:
        operands.append(k_src)
        in_specs.append(pl.BlockSpec((1, S, D), lambda b: (b, 0, 0)))
    operands.append(v_src)
    in_specs.append(pl.BlockSpec((1, S, D), lambda b: (b, 0, 0)))
    if has_am:
        if attn_mask.dtype == jnp.bool_:
            am = jnp.where(attn_mask, NEG_INF, 0.0).astype(jnp.float32)
        else:
            am = attn_mask.astype(jnp.float32)
        operands.append(am)
        in_specs.append(pl.BlockSpec((T, S), lambda b: (0, 0)))
    if has_kpm:
        kpm = jnp.where(key_padding_mask, NEG_INF, 0.0).astype(jnp.float32)
        operands.append(kpm.reshape(B, 1, S))
        in_specs.append(pl.BlockSpec((1, 1, S), lambda b: (b, 0, 0)))
    operands += [wqkv, bqkv, wo, bo, residual,
                 ln_g.reshape(1, D).astype(jnp.float32),
                 ln_b.reshape(1, D).astype(jnp.float32)]
    in_specs += [
        pl.BlockSpec((D, 3 * D), lambda b: (0, 0)),
        pl.BlockSpec((1, 3 * D), lambda b: (0, 0)),
        pl.BlockSpec((D, D), lambda b: (0, 0)),
        pl.BlockSpec((1, D), lambda b: (0, 0)),
        pl.BlockSpec((1, T, D), lambda b: (b, 0, 0)),
        pl.BlockSpec((1, D), lambda b: (0, 0)),
        pl.BlockSpec((1, D), lambda b: (0, 0)),
    ]

    kern = functools.partial(
        _mha_block_kernel, num_heads=H, scale=float(dh) ** -0.5, eps=LN_EPS,
        has_am=has_am, has_kpm=has_kpm, same_qk=same_qk)

    return pl.pallas_call(
        kern,
        out_shape=jax.ShapeDtypeStruct((B, T, D), jnp.float32),
        grid=(B,),
        in_specs=in_specs,
        out_specs=pl.BlockSpec((1, T, D), lambda b: (b, 0, 0)),
        compiler_params=pltpu.CompilerParams(dimension_semantics=("parallel",)),
    )(*operands)


def _pick_row_tile(m, cap=512):
    if m <= cap:
        return m
    for t in (512, 256, 128, 64, 32, 16, 8):
        if m % t == 0:
            return t
    return m


def fused_ffn_ln(x, w1_bf16, b1, w2_bf16, b2, ln_g, ln_b):
    """x: (M, D) f32.  Returns LayerNorm(x + linear2(relu(linear1(x))))."""
    M, D = x.shape
    F = w1_bf16.shape[1]
    tm = _pick_row_tile(M)
    kern = functools.partial(_ffn_ln_kernel, eps=LN_EPS)
    return pl.pallas_call(
        kern,
        out_shape=jax.ShapeDtypeStruct((M, D), jnp.float32),
        grid=(M // tm,),
        in_specs=[
            pl.BlockSpec((tm, D), lambda i: (i, 0)),
            pl.BlockSpec((D, F), lambda i: (0, 0)),   # weights stay resident
            pl.BlockSpec((1, F), lambda i: (0, 0)),
            pl.BlockSpec((F, D), lambda i: (0, 0)),
            pl.BlockSpec((1, D), lambda i: (0, 0)),
            pl.BlockSpec((1, D), lambda i: (0, 0)),
            pl.BlockSpec((1, D), lambda i: (0, 0)),
        ],
        out_specs=pl.BlockSpec((tm, D), lambda i: (i, 0)),
        compiler_params=pltpu.CompilerParams(dimension_semantics=("parallel",)),
    )(x, w1_bf16, b1.reshape(1, F).astype(jnp.float32),
      w2_bf16, b2.reshape(1, D).astype(jnp.float32),
      ln_g.reshape(1, D).astype(jnp.float32), ln_b.reshape(1, D).astype(jnp.float32))


# ------------------------- Module-level forward pass ---------------------------

def transformer_decoder_layer_forward(params, tgt, tgt_mask, memory, memory_mask,
                                      memory_pos, query_pos):
    """forward_post path (pre_norm=False default).  Dropout = identity (eval)."""
    T, B, D = tgt.shape
    H = params["num_heads"]

    # Internal batch-first layout: one transpose in / out; between pallas calls
    # everything stays (B, L, D) so there are no per-block HBM transposes.
    tgt_b = jnp.transpose(tgt, (1, 0, 2))
    mem_b = jnp.transpose(memory, (1, 0, 2))
    qpos_b = None if query_pos is None else jnp.transpose(query_pos, (1, 0, 2))
    mpos_b = None if memory_pos is None else jnp.transpose(memory_pos, (1, 0, 2))

    # --- self-attention block: q = k = tgt + query_pos, v = tgt (fused) ---
    qk = tgt_b if qpos_b is None else tgt_b + qpos_b
    x = fused_mha_block(qk, qk, tgt_b, tgt_b, params["self_attn"],
                        params["norm1"]["g"], params["norm1"]["b"], H,
                        attn_mask=tgt_mask)

    # --- cross-attention block: q = x + query_pos, k = memory + memory_pos, v = memory ---
    q = x if qpos_b is None else x + qpos_b
    kk = mem_b if mpos_b is None else mem_b + mpos_b
    x = fused_mha_block(q, kk, mem_b, x, params["cross_attn"],
                        params["norm2"]["g"], params["norm2"]["b"], H,
                        key_padding_mask=memory_mask)

    # --- FFN block: linear1 -> relu -> linear2 + residual + LayerNorm (fused, row-tiled) ---
    xf = x.reshape(B * T, D)
    w1 = params["linear1"]["w"].T.astype(jnp.bfloat16)
    w2 = params["linear2"]["w"].T.astype(jnp.bfloat16)
    y = fused_ffn_ln(xf, w1, params["linear1"]["b"], w2, params["linear2"]["b"],
                     params["norm3"]["g"], params["norm3"]["b"])
    return jnp.transpose(y.reshape(B, T, D), (1, 0, 2))
    # TODO(synk): forward_pre (pre_norm=True) path not implemented; default module is post-norm.


# ------------------------------ Parameter init --------------------------------

def init_params(key, hidden_dim, num_heads, ffn_dim):
    D, F = hidden_dim, ffn_dim
    ks = jax.random.split(key, 12)

    def w(k, shape, scale=0.02):
        return scale * jax.random.normal(k, shape, jnp.float32)

    def attn_params(k0, k1, k2, k3):
        return {
            "in_proj_w": w(k0, (3 * D, D)),   # torch (out, in) layout
            "in_proj_b": w(k1, (3 * D,)),
            "out_w": w(k2, (D, D)),
            "out_b": w(k3, (D,)),
        }

    return {
        "num_heads": num_heads,
        "self_attn": attn_params(ks[0], ks[1], ks[2], ks[3]),
        "cross_attn": attn_params(ks[4], ks[5], ks[6], ks[7]),
        "norm1": {"g": jnp.ones((D,), jnp.float32), "b": jnp.zeros((D,), jnp.float32)},
        "norm2": {"g": jnp.ones((D,), jnp.float32), "b": jnp.zeros((D,), jnp.float32)},
        "norm3": {"g": jnp.ones((D,), jnp.float32), "b": jnp.zeros((D,), jnp.float32)},
        "linear1": {"w": w(ks[8], (F, D)), "b": w(ks[9], (F,))},
        "linear2": {"w": w(ks[10], (D, F)), "b": w(ks[11], (D,))},
    }


# ------------------------------------ main -------------------------------------

if __name__ == "__main__":
    hidden_dim, num_heads, ffn_dim = 32, 4, 64
    T, S, B = 8, 10, 2   # tgt length, memory length, batch

    key = jax.random.PRNGKey(0)
    kp, kt, km, kqp, kmp = jax.random.split(key, 5)

    params = init_params(kp, hidden_dim, num_heads, ffn_dim)

    tgt = jax.random.normal(kt, (T, B, hidden_dim), jnp.float32)
    memory = jax.random.normal(km, (S, B, hidden_dim), jnp.float32)
    query_pos = jax.random.normal(kqp, (T, B, hidden_dim), jnp.float32)
    memory_pos = jax.random.normal(kmp, (S, B, hidden_dim), jnp.float32)

    tgt_mask = None                                                   # no self-attn mask
    memory_mask = jnp.zeros((B, S), jnp.bool_).at[1, -2:].set(True)   # key_padding_mask

    out = transformer_decoder_layer_forward(
        params, tgt, tgt_mask, memory, memory_mask, memory_pos, query_pos)
    out = jax.block_until_ready(out)

    assert out.shape == (T, B, hidden_dim)
    assert bool(jnp.all(jnp.isfinite(out)))
    print("KERNEL_OK")
</pallas_src>

<mosaic_0001>
module attributes {stable_mosaic.version = 11 : i64} {
  func.func @_mha_block_kernel(%arg0: i32, %arg1: memref<1x8x32xf32, #tpu.memory_space<vmem>>, %arg2: memref<1x8x32xf32, #tpu.memory_space<vmem>>, %arg3: memref<32x96xbf16, #tpu.memory_space<vmem>>, %arg4: memref<1x96xf32, #tpu.memory_space<vmem>>, %arg5: memref<32x32xbf16, #tpu.memory_space<vmem>>, %arg6: memref<1x32xf32, #tpu.memory_space<vmem>>, %arg7: memref<1x8x32xf32, #tpu.memory_space<vmem>>, %arg8: memref<1x32xf32, #tpu.memory_space<vmem>>, %arg9: memref<1x32xf32, #tpu.memory_space<vmem>>, %arg10: memref<1x8x32xf32, #tpu.memory_space<vmem>>) attributes {dimension_semantics = [#tpu.dimension_semantics<parallel>], iteration_bounds = array<i64: 2>, scalar_prefetch = 0 : i64, scratch_operands = 0 : i64, tpu.core_type = #tpu.core_type<tc>, window_params = [{transform_indices = @transform_0, window_bounds = array<i64: 1, 8, 32>}, {transform_indices = @transform_1, window_bounds = array<i64: 1, 8, 32>}, {pipeline_mode = #tpu.pipeline_mode<synchronous>, transform_indices = @transform_2, window_bounds = array<i64: 32, 96>}, {pipeline_mode = #tpu.pipeline_mode<synchronous>, transform_indices = @transform_3, window_bounds = array<i64: 1, 96>}, {pipeline_mode = #tpu.pipeline_mode<synchronous>, transform_indices = @transform_4, window_bounds = array<i64: 32, 32>}, {pipeline_mode = #tpu.pipeline_mode<synchronous>, transform_indices = @transform_5, window_bounds = array<i64: 1, 32>}, {transform_indices = @transform_6, window_bounds = array<i64: 1, 8, 32>}, {pipeline_mode = #tpu.pipeline_mode<synchronous>, transform_indices = @transform_7, window_bounds = array<i64: 1, 32>}, {pipeline_mode = #tpu.pipeline_mode<synchronous>, transform_indices = @transform_8, window_bounds = array<i64: 1, 32>}, {transform_indices = @transform_9, window_bounds = array<i64: 1, 8, 32>}]} {
    %c0 = arith.constant 0 : index
    %c0_0 = arith.constant 0 : index
    %0 = vector.load %arg4[%c0, %c0_0] : memref<1x96xf32, #tpu.memory_space<vmem>>, vector<1x96xf32>
    %c0_1 = arith.constant 0 : index
    %c0_2 = arith.constant 0 : index
    %1 = vector.load %arg6[%c0_1, %c0_2] : memref<1x32xf32, #tpu.memory_space<vmem>>, vector<1x32xf32>
    %c0_3 = arith.constant 0 : index
    %c0_4 = arith.constant 0 : index
    %c0_5 = arith.constant 0 : index
    %2 = vector.load %arg7[%c0_3, %c0_4, %c0_5] : memref<1x8x32xf32, #tpu.memory_space<vmem>>, vector<1x8x32xf32>
    %3 = vector.shape_cast %2 : vector<1x8x32xf32> to vector<8x32xf32>
    %c0_6 = arith.constant 0 : index
    %c0_7 = arith.constant 0 : index
    %4 = vector.load %arg8[%c0_6, %c0_7] : memref<1x32xf32, #tpu.memory_space<vmem>>, vector<1x32xf32>
    %c0_8 = arith.constant 0 : index
    %c0_9 = arith.constant 0 : index
    %5 = vector.load %arg9[%c0_8, %c0_9] : memref<1x32xf32, #tpu.memory_space<vmem>>, vector<1x32xf32>
    %c0_10 = arith.constant 0 : index
    %c0_11 = arith.constant 0 : index
    %c0_12 = arith.constant 0 : index
    %6 = vector.load %arg1[%c0_10, %c0_11, %c0_12] : memref<1x8x32xf32, #tpu.memory_space<vmem>>, vector<1x8x32xf32>
    %7 = vector.shape_cast %6 : vector<1x8x32xf32> to vector<8x32xf32>
    %c0_13 = arith.constant 0 : index
    %c0_14 = arith.constant 0 : index
    %c0_15 = arith.constant 0 : index
    %8 = vector.load %arg2[%c0_13, %c0_14, %c0_15] : memref<1x8x32xf32, #tpu.memory_space<vmem>>, vector<1x8x32xf32>
    %9 = vector.shape_cast %8 : vector<1x8x32xf32> to vector<8x32xf32>
    %10 = arith.truncf %7 : vector<8x32xf32> to vector<8x32xbf16>
    %c0_16 = arith.constant 0 : index
    %c0_17 = arith.constant 0 : index
    %11 = vector.load %arg3[%c0_16, %c0_17] : memref<32x96xbf16, #tpu.memory_space<vmem>>, vector<32x64xbf16>
    %cst = arith.constant dense<0.000000e+00> : vector<8x64xf32>
    %12 = tpu.matmul %10, %11, %cst {dimension_numbers = #tpu.dot_dimension_numbers<[1], [0], [0], [1], [0, 0, 1, 1], [], []>} : vector<8x32xbf16>, vector<32x64xbf16>, vector<8x64xf32> -> vector<8x64xf32>
    %13 = vector.extract_strided_slice %0 {offsets = [0, 0], sizes = [1, 64], strides = [1, 1]} : vector<1x96xf32> to vector<1x64xf32>
    %14 = vector.broadcast %13 : vector<1x64xf32> to vector<8x64xf32>
    %15 = arith.addf %12, %14 : vector<8x64xf32>
    %16 = vector.extract_strided_slice %15 {offsets = [0, 0], sizes = [8, 32], strides = [1, 1]} : vector<8x64xf32> to vector<8x32xf32>
    %17 = vector.extract_strided_slice %15 {offsets = [0, 32], sizes = [8, 32], strides = [1, 1]} : vector<8x64xf32> to vector<8x32xf32>
    %18 = arith.truncf %9 : vector<8x32xf32> to vector<8x32xbf16>
    %c0_18 = arith.constant 0 : index
    %c64 = arith.constant 64 : index
    %19 = vector.load %arg3[%c0_18, %c64] : memref<32x96xbf16, #tpu.memory_space<vmem>>, vector<32x32xbf16>
    %cst_19 = arith.constant dense<0.000000e+00> : vector<8x32xf32>
    %20 = tpu.matmul %18, %19, %cst_19 {dimension_numbers = #tpu.dot_dimension_numbers<[1], [0], [0], [1], [0, 0, 1, 1], [], []>} : vector<8x32xbf16>, vector<32x32xbf16>, vector<8x32xf32> -> vector<8x32xf32>
    %21 = vector.extract_strided_slice %0 {offsets = [0, 64], sizes = [1, 32], strides = [1, 1]} : vector<1x96xf32> to vector<1x32xf32>
    %22 = vector.broadcast %21 : vector<1x32xf32> to vector<8x32xf32>
    %23 = arith.addf %20, %22 : vector<8x32xf32>
    %cst_20 = arith.constant 0.000000e+00 : f32
    %24 = vector.broadcast %cst_20 : f32 to vector<8x32xf32>
    %25 = vector.extract_strided_slice %16 {offsets = [0, 0], sizes = [8, 8], strides = [1, 1]} : vector<8x32xf32> to vector<8x8xf32>
    %cst_21 = arith.constant 0.353553385 : f32
    %26 = vector.broadcast %cst_21 : f32 to vector<8x8xf32>
    %27 = arith.mulf %25, %26 : vector<8x8xf32>
    %28 = arith.truncf %27 : vector<8x8xf32> to vector<8x8xbf16>
    %29 = vector.extract_strided_slice %17 {offsets = [0, 0], sizes = [8, 8], strides = [1, 1]} : vector<8x32xf32> to vector<8x8xf32>
    %30 = arith.truncf %29 : vector<8x8xf32> to vector<8x8xbf16>
    %31 = vector.extract_strided_slice %23 {offsets = [0, 0], sizes = [8, 8], strides = [1, 1]} : vector<8x32xf32> to vector<8x8xf32>
    %32 = arith.truncf %31 : vector<8x8xf32> to vector<8x8xbf16>
    %cst_22 = arith.constant dense<0.000000e+00> : vector<8x8xf32>
    %33 = tpu.matmul %28, %30, %cst_22 {dimension_numbers = #tpu.dot_dimension_numbers<[1], [1], [0], [0], [0, 0, 1, 0], [], []>} : vector<8x8xbf16>, vector<8x8xbf16>, vector<8x8xf32> -> vector<8x8xf32>
    %cst_23 = arith.constant dense<0xFF800000> : vector<8xf32>
    %34 = vector.multi_reduction <maximumf>, %33, %cst_23 [1] : vector<8x8xf32> to vector<8xf32>
    %35 = vector.shape_cast %34 : vector<8xf32> to vector<8x1xf32>
    %36 = vector.broadcast %35 : vector<8x1xf32> to vector<8x8xf32>
    %37 = arith.subf %33, %36 : vector<8x8xf32>
    %38 = math.exp %37 : vector<8x8xf32>
    %cst_24 = arith.constant dense<0.000000e+00> : vector<8xf32>
    %39 = vector.multi_reduction <add>, %38, %cst_24 [1] : vector<8x8xf32> to vector<8xf32>
    %40 = vector.shape_cast %39 : vector<8xf32> to vector<8x1xf32>
    %41 = tpu.reciprocal %40 {approx = true} : vector<8x1xf32> -> vector<8x1xf32>
    %42 = vector.broadcast %41 : vector<8x1xf32> to vector<8x8xf32>
    %43 = arith.mulf %38, %42 : vector<8x8xf32>
    %44 = arith.truncf %43 : vector<8x8xf32> to vector<8x8xbf16>
    %cst_25 = arith.constant dense<0.000000e+00> : vector<8x8xf32>
    %45 = tpu.matmul %44, %32, %cst_25 {dimension_numbers = #tpu.dot_dimension_numbers<[1], [0], [0], [1], [0, 0, 1, 1], [], []>} : vector<8x8xbf16>, vector<8x8xbf16>, vector<8x8xf32> -> vector<8x8xf32>
    %46 = arith.truncf %45 : vector<8x8xf32> to vector<8x8xbf16>
    %c0_26 = arith.constant 0 : index
    %c0_27 = arith.constant 0 : index
    %47 = vector.load %arg5[%c0_26, %c0_27] : memref<32x32xbf16, #tpu.memory_space<vmem>>, vector<8x32xbf16>
    %cst_28 = arith.constant dense<0.000000e+00> : vector<8x32xf32>
    %48 = tpu.matmul %46, %47, %cst_28 {dimension_numbers = #tpu.dot_dimension_numbers<[1], [0], [0], [1], [0, 0, 1, 1], [], []>} : vector<8x8xbf16>, vector<8x32xbf16>, vector<8x32xf32> -> vector<8x32xf32>
    %49 = arith.addf %24, %48 : vector<8x32xf32>
    %50 = vector.extract_strided_slice %16 {offsets = [0, 8], sizes = [8, 8], strides = [1, 1]} : vector<8x32xf32> to vector<8x8xf32>
    %cst_29 = arith.constant 0.353553385 : f32
    %51 = vector.broadcast %cst_29 : f32 to vector<8x8xf32>
    %52 = arith.mulf %50, %51 : vector<8x8xf32>
    %53 = arith.truncf %52 : vector<8x8xf32> to vector<8x8xbf16>
    %54 = vector.extract_strided_slice %17 {offsets = [0, 8], sizes = [8, 8], strides = [1, 1]} : vector<8x32xf32> to vector<8x8xf32>
    %55 = arith.truncf %54 : vector<8x8xf32> to vector<8x8xbf16>
    %56 = vector.extract_strided_slice %23 {offsets = [0, 8], sizes = [8, 8], strides = [1, 1]} : vector<8x32xf32> to vector<8x8xf32>
    %57 = arith.truncf %56 : vector<8x8xf32> to vector<8x8xbf16>
    %cst_30 = arith.constant dense<0.000000e+00> : vector<8x8xf32>
    %58 = tpu.matmul %53, %55, %cst_30 {dimension_numbers = #tpu.dot_dimension_numbers<[1], [1], [0], [0], [0, 0, 1, 0], [], []>} : vector<8x8xbf16>, vector<8x8xbf16>, vector<8x8xf32> -> vector<8x8xf32>
    %cst_31 = arith.constant dense<0xFF800000> : vector<8xf32>
    %59 = vector.multi_reduction <maximumf>, %58, %cst_31 [1] : vector<8x8xf32> to vector<8xf32>
    %60 = vector.shape_cast %59 : vector<8xf32> to vector<8x1xf32>
    %61 = vector.broadcast %60 : vector<8x1xf32> to vector<8x8xf32>
    %62 = arith.subf %58, %61 : vector<8x8xf32>
    %63 = math.exp %62 : vector<8x8xf32>
    %cst_32 = arith.constant dense<0.000000e+00> : vector<8xf32>
    %64 = vector.multi_reduction <add>, %63, %cst_32 [1] : vector<8x8xf32> to vector<8xf32>
    %65 = vector.shape_cast %64 : vector<8xf32> to vector<8x1xf32>
    %66 = tpu.reciprocal %65 {approx = true} : vector<8x1xf32> -> vector<8x1xf32>
    %67 = vector.broadcast %66 : vector<8x1xf32> to vector<8x8xf32>
    %68 = arith.mulf %63, %67 : vector<8x8xf32>
    %69 = arith.truncf %68 : vector<8x8xf32> to vector<8x8xbf16>
    %cst_33 = arith.constant dense<0.000000e+00> : vector<8x8xf32>
    %70 = tpu.matmul %69, %57, %cst_33 {dimension_numbers = #tpu.dot_dimension_numbers<[1], [0], [0], [1], [0, 0, 1, 1], [], []>} : vector<8x8xbf16>, vector<8x8xbf16>, vector<8x8xf32> -> vector<8x8xf32>
    %71 = arith.truncf %70 : vector<8x8xf32> to vector<8x8xbf16>
    %c8 = arith.constant 8 : index
    %c0_34 = arith.constant 0 : index
    %72 = vector.load %arg5[%c8, %c0_34] : memref<32x32xbf16, #tpu.memory_space<vmem>>, vector<8x32xbf16>
    %cst_35 = arith.constant dense<0.000000e+00> : vector<8x32xf32>
    %73 = tpu.matmul %71, %72, %cst_35 {dimension_numbers = #tpu.dot_dimension_numbers<[1], [0], [0], [1], [0, 0, 1, 1], [], []>} : vector<8x8xbf16>, vector<8x32xbf16>, vector<8x32xf32> -> vector<8x32xf32>
    %74 = arith.addf %49, %73 : vector<8x32xf32>
    %75 = vector.extract_strided_slice %16 {offsets = [0, 16], sizes = [8, 8], strides = [1, 1]} : vector<8x32xf32> to vector<8x8xf32>
    %cst_36 = arith.constant 0.353553385 : f32
    %76 = vector.broadcast %cst_36 : f32 to vector<8x8xf32>
    %77 = arith.mulf %75, %76 : vector<8x8xf32>
    %78 = arith.truncf %77 : vector<8x8xf32> to vector<8x8xbf16>
    %79 = vector.extract_strided_slice %17 {offsets = [0, 16], sizes = [8, 8], strides = [1, 1]} : vector<8x32xf32> to vector<8x8xf32>
    %80 = arith.truncf %79 : vector<8x8xf32> to vector<8x8xbf16>
    %81 = vector.extract_strided_slice %23 {offsets = [0, 16], sizes = [8, 8], strides = [1, 1]} : vector<8x32xf32> to vector<8x8xf32>
    %82 = arith.truncf %81 : vector<8x8xf32> to vector<8x8xbf16>
    %cst_37 = arith.constant dense<0.000000e+00> : vector<8x8xf32>
    %83 = tpu.matmul %78, %80, %cst_37 {dimension_numbers = #tpu.dot_dimension_numbers<[1], [1], [0], [0], [0, 0, 1, 0], [], []>} : vector<8x8xbf16>, vector<8x8xbf16>, vector<8x8xf32> -> vector<8x8xf32>
    %cst_38 = arith.constant dense<0xFF800000> : vector<8xf32>
    %84 = vector.multi_reduction <maximumf>, %83, %cst_38 [1] : vector<8x8xf32> to vector<8xf32>
    %85 = vector.shape_cast %84 : vector<8xf32> to vector<8x1xf32>
    %86 = vector.broadcast %85 : vector<8x1xf32> to vector<8x8xf32>
    %87 = arith.subf %83, %86 : vector<8x8xf32>
    %88 = math.exp %87 : vector<8x8xf32>
    %cst_39 = arith.constant dense<0.000000e+00> : vector<8xf32>
    %89 = vector.multi_reduction <add>, %88, %cst_39 [1] : vector<8x8xf32> to vector<8xf32>
    %90 = vector.shape_cast %89 : vector<8xf32> to vector<8x1xf32>
    %91 = tpu.reciprocal %90 {approx = true} : vector<8x1xf32> -> vector<8x1xf32>
    %92 = vector.broadcast %91 : vector<8x1xf32> to vector<8x8xf32>
    %93 = arith.mulf %88, %92 : vector<8x8xf32>
    %94 = arith.truncf %93 : vector<8x8xf32> to vector<8x8xbf16>
    %cst_40 = arith.constant dense<0.000000e+00> : vector<8x8xf32>
    %95 = tpu.matmul %94, %82, %cst_40 {dimension_numbers = #tpu.dot_dimension_numbers<[1], [0], [0], [1], [0, 0, 1, 1], [], []>} : vector<8x8xbf16>, vector<8x8xbf16>, vector<8x8xf32> -> vector<8x8xf32>
    %96 = arith.truncf %95 : vector<8x8xf32> to vector<8x8xbf16>
    %c16 = arith.constant 16 : index
    %c0_41 = arith.constant 0 : index
    %97 = vector.load %arg5[%c16, %c0_41] : memref<32x32xbf16, #tpu.memory_space<vmem>>, vector<8x32xbf16>
    %cst_42 = arith.constant dense<0.000000e+00> : vector<8x32xf32>
    %98 = tpu.matmul %96, %97, %cst_42 {dimension_numbers = #tpu.dot_dimension_numbers<[1], [0], [0], [1], [0, 0, 1, 1], [], []>} : vector<8x8xbf16>, vector<8x32xbf16>, vector<8x32xf32> -> vector<8x32xf32>
    %99 = arith.addf %74, %98 : vector<8x32xf32>
    %100 = vector.extract_strided_slice %16 {offsets = [0, 24], sizes = [8, 8], strides = [1, 1]} : vector<8x32xf32> to vector<8x8xf32>
    %cst_43 = arith.constant 0.353553385 : f32
    %101 = vector.broadcast %cst_43 : f32 to vector<8x8xf32>
    %102 = arith.mulf %100, %101 : vector<8x8xf32>
    %103 = arith.truncf %102 : vector<8x8xf32> to vector<8x8xbf16>
    %104 = vector.extract_strided_slice %17 {offsets = [0, 24], sizes = [8, 8], strides = [1, 1]} : vector<8x32xf32> to vector<8x8xf32>
    %105 = arith.truncf %104 : vector<8x8xf32> to vector<8x8xbf16>
    %106 = vector.extract_strided_slice %23 {offsets = [0, 24], sizes = [8, 8], strides = [1, 1]} : vector<8x32xf32> to vector<8x8xf32>
    %107 = arith.truncf %106 : vector<8x8xf32> to vector<8x8xbf16>
    %cst_44 = arith.constant dense<0.000000e+00> : vector<8x8xf32>
    %108 = tpu.matmul %103, %105, %cst_44 {dimension_numbers = #tpu.dot_dimension_numbers<[1], [1], [0], [0], [0, 0, 1, 0], [], []>} : vector<8x8xbf16>, vector<8x8xbf16>, vector<8x8xf32> -> vector<8x8xf32>
    %cst_45 = arith.constant dense<0xFF800000> : vector<8xf32>
    %109 = vector.multi_reduction <maximumf>, %108, %cst_45 [1] : vector<8x8xf32> to vector<8xf32>
    %110 = vector.shape_cast %109 : vector<8xf32> to vector<8x1xf32>
    %111 = vector.broadcast %110 : vector<8x1xf32> to vector<8x8xf32>
    %112 = arith.subf %108, %111 : vector<8x8xf32>
    %113 = math.exp %112 : vector<8x8xf32>
    %cst_46 = arith.constant dense<0.000000e+00> : vector<8xf32>
    %114 = vector.multi_reduction <add>, %113, %cst_46 [1] : vector<8x8xf32> to vector<8xf32>
    %115 = vector.shape_cast %114 : vector<8xf32> to vector<8x1xf32>
    %116 = tpu.reciprocal %115 {approx = true} : vector<8x1xf32> -> vector<8x1xf32>
    %117 = vector.broadcast %116 : vector<8x1xf32> to vector<8x8xf32>
    %118 = arith.mulf %113, %117 : vector<8x8xf32>
    %119 = arith.truncf %118 : vector<8x8xf32> to vector<8x8xbf16>
    %cst_47 = arith.constant dense<0.000000e+00> : vector<8x8xf32>
    %120 = tpu.matmul %119, %107, %cst_47 {dimension_numbers = #tpu.dot_dimension_numbers<[1], [0], [0], [1], [0, 0, 1, 1], [], []>} : vector<8x8xbf16>, vector<8x8xbf16>, vector<8x8xf32> -> vector<8x8xf32>
    %121 = arith.truncf %120 : vector<8x8xf32> to vector<8x8xbf16>
    %c24 = arith.constant 24 : index
    %c0_48 = arith.constant 0 : index
    %122 = vector.load %arg5[%c24, %c0_48] : memref<32x32xbf16, #tpu.memory_space<vmem>>, vector<8x32xbf16>
    %cst_49 = arith.constant dense<0.000000e+00> : vector<8x32xf32>
    %123 = tpu.matmul %121, %122, %cst_49 {dimension_numbers = #tpu.dot_dimension_numbers<[1], [0], [0], [1], [0, 0, 1, 1], [], []>} : vector<8x8xbf16>, vector<8x32xbf16>, vector<8x32xf32> -> vector<8x32xf32>
    %124 = arith.addf %99, %123 : vector<8x32xf32>
    %125 = arith.addf %3, %124 : vector<8x32xf32>
    %126 = vector.broadcast %1 : vector<1x32xf32> to vector<8x32xf32>
    %127 = arith.addf %125, %126 : vector<8x32xf32>
    %cst_50 = arith.constant dense<0.000000e+00> : vector<8xf32>
    %128 = vector.multi_reduction <add>, %127, %cst_50 [1] : vector<8x32xf32> to vector<8xf32>
    %129 = vector.shape_cast %128 : vector<8xf32> to vector<8x1xf32>
    %cst_51 = arith.constant 3.200000e+01 : f32
    %130 = vector.broadcast %cst_51 : f32 to vector<8x1xf32>
    %131 = arith.divf %129, %130 : vector<8x1xf32>
    %132 = vector.broadcast %131 : vector<8x1xf32> to vector<8x32xf32>
    %133 = arith.subf %127, %132 : vector<8x32xf32>
    %134 = arith.mulf %133, %133 : vector<8x32xf32>
    %cst_52 = arith.constant dense<0.000000e+00> : vector<8xf32>
    %135 = vector.multi_reduction <add>, %134, %cst_52 [1] : vector<8x32xf32> to vector<8xf32>
    %136 = vector.shape_cast %135 : vector<8xf32> to vector<8x1xf32>
    %cst_53 = arith.constant 3.200000e+01 : f32
    %137 = vector.broadcast %cst_53 : f32 to vector<8x1xf32>
    %138 = arith.divf %136, %137 : vector<8x1xf32>
    %cst_54 = arith.constant 9.99999974E-6 : f32
    %139 = vector.broadcast %cst_54 : f32 to vector<8x1xf32>
    %140 = arith.addf %138, %139 : vector<8x1xf32>
    %141 = math.rsqrt %140 : vector<8x1xf32>
    %142 = vector.broadcast %141 : vector<8x1xf32> to vector<8x32xf32>
    %143 = arith.mulf %133, %142 : vector<8x32xf32>
    %144 = vector.broadcast %4 : vector<1x32xf32> to vector<8x32xf32>
    %145 = arith.mulf %143, %144 : vector<8x32xf32>
    %146 = vector.broadcast %5 : vector<1x32xf32> to vector<8x32xf32>
    %147 = arith.addf %145, %146 : vector<8x32xf32>
    %c0_55 = arith.constant 0 : index
    %c0_56 = arith.constant 0 : index
    %c0_57 = arith.constant 0 : index
    %148 = vector.load %arg10[%c0_55, %c0_56, %c0_57] : memref<1x8x32xf32, #tpu.memory_space<vmem>>, vector<1x8x32xf32>
    %149 = vector.shape_cast %148 : vector<1x8x32xf32> to vector<8x32xf32>
    %150 = vector.shape_cast %147 : vector<8x32xf32> to vector<1x8x32xf32>
    tpu.vector_store %arg10[%c0_55, %c0_56, %c0_57], %150 {strides = array<i32>} : memref<1x8x32xf32, #tpu.memory_space<vmem>>, vector<1x8x32xf32>,
    return
  }
  func.func @transform_0(%arg0: i32) -> (i32, i32, i32) {
    %c0_i32 = arith.constant 0 : i32
    %c0_i32_0 = arith.constant 0 : i32
    %c0_i32_1 = arith.constant 0 : i32
    return %arg0, %c0_i32, %c0_i32_0 : i32, i32, i32
  }
  func.func @transform_1(%arg0: i32) -> (i32, i32, i32) {
    %c0_i32 = arith.constant 0 : i32
    %c0_i32_0 = arith.constant 0 : i32
    %c0_i32_1 = arith.constant 0 : i32
    return %arg0, %c0_i32, %c0_i32_0 : i32, i32, i32
  }
  func.func @transform_2(%arg0: i32) -> (i32, i32) {
    %c0_i32 = arith.constant 0 : i32
    %c0_i32_0 = arith.constant 0 : i32
    %c0_i32_1 = arith.constant 0 : i32
    return %c0_i32, %c0_i32_0 : i32, i32
  }
  func.func @transform_3(%arg0: i32) -> (i32, i32) {
    %c0_i32 = arith.constant 0 : i32
    %c0_i32_0 = arith.constant 0 : i32
    %c0_i32_1 = arith.constant 0 : i32
    return %c0_i32, %c0_i32_0 : i32, i32
  }
  func.func @transform_4(%arg0: i32) -> (i32, i32) {
    %c0_i32 = arith.constant 0 : i32
    %c0_i32_0 = arith.constant 0 : i32
    %c0_i32_1 = arith.constant 0 : i32
    return %c0_i32, %c0_i32_0 : i32, i32
  }
  func.func @transform_5(%arg0: i32) -> (i32, i32) {
    %c0_i32 = arith.constant 0 : i32
    %c0_i32_0 = arith.constant 0 : i32
    %c0_i32_1 = arith.constant 0 : i32
    return %c0_i32, %c0_i32_0 : i32, i32
  }
  func.func @transform_6(%arg0: i32) -> (i32, i32, i32) {
    %c0_i32 = arith.constant 0 : i32
    %c0_i32_0 = arith.constant 0 : i32
    %c0_i32_1 = arith.constant 0 : i32
    return %arg0, %c0_i32, %c0_i32_0 : i32, i32, i32
  }
  func.func @transform_7(%arg0: i32) -> (i32, i32) {
    %c0_i32 = arith.constant 0 : i32
    %c0_i32_0 = arith.constant 0 : i32
    %c0_i32_1 = arith.constant 0 : i32
    return %c0_i32, %c0_i32_0 : i32, i32
  }
  func.func @transform_8(%arg0: i32) -> (i32, i32) {
    %c0_i32 = arith.constant 0 : i32
    %c0_i32_0 = arith.constant 0 : i32
    %c0_i32_1 = arith.constant 0 : i32
    return %c0_i32, %c0_i32_0 : i32, i32
  }
  func.func @transform_9(%arg0: i32) -> (i32, i32, i32) {
    %c0_i32 = arith.constant 0 : i32
    %c0_i32_0 = arith.constant 0 : i32
    %c0_i32_1 = arith.constant 0 : i32
    return %arg0, %c0_i32, %c0_i32_0 : i32, i32, i32
  }
}

</mosaic_0001>

<llo_original>
// kernel: tpu_custom_call.1
$region0: #{tpu_custom_call.1}
  #allocation0 [shape = 'u32[]', space=smem, size = 0x4, offset = 0x4, fixed_abs, tag = 'smem constant byte address 0x4 - core index']
  #allocation1 [shape = 'u32[144,128]{1,0:T(1,128)}', space=vmem, size = 0x12000, scoped, tag = 'internal scratch']
  %s0 = inlined_call_operand.hbm [shape: f32[2,8,32], index: 0, kind: input, shape index: {}]
  %s1 = inlined_call_operand.hbm [shape: f32[2,8,32], index: 1, kind: input, shape index: {}]
  %s2 = inlined_call_operand.hbm [shape: bf16[32,96], index: 2, kind: input, shape index: {}]
  %s3 = inlined_call_operand.vmem [shape: f32[1,96], index: 3, kind: input, shape index: {}]
  %s4 = inlined_call_operand.hbm [shape: bf16[32,32], index: 4, kind: input, shape index: {}]
  %s5 = inlined_call_operand.vmem [shape: f32[1,32], index: 5, kind: input, shape index: {}]
  %s6 = inlined_call_operand.vmem [shape: f32[2,8,32], index: 6, kind: input, shape index: {}]
  %s7 = inlined_call_operand.vmem [shape: f32[1,32], index: 7, kind: input, shape index: {}]
  %s8 = inlined_call_operand.vmem [shape: f32[1,32], index: 8, kind: input, shape index: {}]
  %s9 = inlined_call_operand.hbm [shape: f32[2,8,32], index: 9, kind: output, shape index: {}]
  %s10 = sld [smem:[#allocation0]]
  $region85: #{tpu_custom_call.1} parent=0
    _
  %s12 = ssub.s32 1, %s10
  %s13 = scalar_select 0, %s12, %s10
  $region1: #{tpu_custom_call.1} parent=0
    #allocation2 [shape = 'u8[8192]{0}', space=vmem, size = 0x2000, scoped, tag = 'input window, operand 0']
    #allocation3 [shape = 's32[2]{0}', space=sflag, size = 0x8, scoped, tag = 'scoped memory for tpu_custom_call.1']
    #allocation4 [shape = 's32[2]{0}', space=sflag, size = 0x8, scoped, tag = 'scoped memory for tpu_custom_call.1']
    #allocation5 [shape = 'u8[8192]{0}', space=vmem, size = 0x2000, scoped, tag = 'input window, operand 1']
    #allocation6 [shape = 's32[2]{0}', space=sflag, size = 0x8, scoped, tag = 'scoped memory for tpu_custom_call.1']
    #allocation7 [shape = 'u8[8192]{0}', space=vmem, size = 0x2000, scoped, tag = 'input window, operand 2, single buffered']
    #allocation8 [shape = 'u8[8192]{0}', space=vmem, size = 0x2000, scoped, tag = 'input window, operand 4, single buffered']
    #allocation9 [shape = 's32[1]{0}', space=sflag, size = 0x4, scoped, tag = 'scoped memory for tpu_custom_call.1']
    #allocation10 [shape = 'u8[8192]{0}', space=vmem, size = 0x2000, scoped, tag = 'output window, operand 0']
    %14 = vsyncpa [#allocation3], 0
    %s15 = scalar_lea.sflag [#allocation3], 1
    %16 = vsyncpa %s15, 0
    %17 = vsyncpa [#allocation6], 0
    %s18 = scalar_lea.sflag [#allocation6], 1
    %19 = vsyncpa %s18, 0
    %20 = vsyncpa [#allocation9], 0
    %21 = vsyncpa [#allocation4], 0
    %s22 = scalar_lea.sflag [#allocation4], 1
    %23 = vsyncpa %s22, 0
    loop: start=0, step=1, limit=4
    $region2: #{tpu_custom_call.1} parent=1 // loop_pre_header
      _
    $region3: #{tpu_custom_call.1} parent=1 // loop_header
      %s25 = sphi 0, %s29
      %p26 = scmp.ge.s32.totalorder %s25, 4
      %s35 = sphi 0, %s37
      %s38 = sphi 0, %s35
      %s39 = sphi 0, %s38
      %s55 = sphi 0, %s39
      %s61 = sphi 0, %s63
      %s64 = sphi 0, %s61
      %s65 = sphi 0, %s64
      %s81 = sphi 0, %s65
      %s85 = sphi 0, %s85
      %s87 = sphi 0, %s85
      %s88 = sphi 0, %s87
      %s102 = sphi 0, %s88
      %s106 = sphi 0, %s106
      %s108 = sphi 0, %s106
      %s109 = sphi 0, %s108
      %s123 = sphi 0, %s109
      %s127 = sphi 0, %s127
      %s129 = sphi 0, %s127
      %s130 = sphi 0, %s129
      %s144 = sphi 0, %s130
      %s148 = sphi 0, %s148
      %s150 = sphi 0, %s148
      %s151 = sphi 0, %s150
      %s165 = sphi 0, %s151
      %s171 = sphi 0, %s173
      %s174 = sphi 0, %s171
      %s175 = sphi 0, %s174
      %s191 = sphi 0, %s175
      %s195 = sphi 0, %s195
      %s197 = sphi 0, %s195
      %s198 = sphi 0, %s197
      %s212 = sphi 0, %s198
      %s216 = sphi 0, %s216
      %s218 = sphi 0, %s216
      %s219 = sphi 0, %s218
      %s233 = sphi 0, %s219
      %s239 = sphi 0, %s241
      %s242 = sphi 0, %s239
      %s243 = sphi 0, %s242
      %s259 = sphi 0, %s243
    $region4: #{tpu_custom_call.1} parent=1 // loop_header_branch
      %28 = sbr.rel (%p26) target = $region8
    $region5: #{tpu_custom_call.1} parent=1 // loop_body
      %s30 = ssub.s32 %s25, 1
      %s31 = ssub.s32 %s25, 2
      %s32 = sadd.s32 %s25, 1
      %s33 = ssub.s32 %s25, %s32
      %p34 = scmp.eq.s32.totalorder %s33, 0
      %s36 = sadd.s32 %s35, 1
      %s37 = scalar_select %p34, %s35, %s36
      %p40 = pneg %p34
      %p41 = scmp.eq.s32.totalorder %s25, 1
      %p42 = por %p40, %p41
      %p43 = scmp.ne.s32.totalorder %s35, %s38
      %p44 = scmp.eq.s32.totalorder %s25, 0
      %p45 = por %p43, %p44
      %p46 = scmp.ne.s32.totalorder %s35, %s38
      %p47 = scmp.eq.s32.totalorder %s30, 1
      %p48 = por %p46, %p47
      %p49 = scmp.ne.s32.totalorder %s38, %s39
      %p50 = scmp.eq.s32.totalorder %s30, 0
      %p51 = por %p49, %p50
      %p52 = scmp.ne.s32.totalorder %s38, %s39
      %p53 = scmp.eq.s32.totalorder %s31, 1
      %p54 = por %p52, %p53
      %p56 = scmp.ne.s32.totalorder %s39, %s55
      %p57 = scmp.eq.s32.totalorder %s31, 0
      %p58 = por %p56, %p57
      %s59 = ssub.s32 %s25, %s32
      %p60 = scmp.eq.s32.totalorder %s59, 0
      %s62 = sadd.s32 %s61, 1
      %s63 = scalar_select %p60, %s61, %s62
      %p66 = pneg %p60
      %p67 = scmp.eq.s32.totalorder %s25, 1
      %p68 = por %p66, %p67
      %p69 = scmp.ne.s32.totalorder %s61, %s64
      %p70 = scmp.eq.s32.totalorder %s25, 0
      %p71 = por %p69, %p70
      %p72 = scmp.ne.s32.totalorder %s61, %s64
      %p73 = scmp.eq.s32.totalorder %s30, 1
      %p74 = por %p72, %p73
      %p75 = scmp.ne.s32.totalorder %s64, %s65
      %p76 = scmp.eq.s32.totalorder %s30, 0
      %p77 = por %p75, %p76
      %p78 = scmp.ne.s32.totalorder %s64, %s65
      %p79 = scmp.eq.s32.totalorder %s31, 1
      %p80 = por %p78, %p79
      %p82 = scmp.ne.s32.totalorder %s65, %s81
      %p83 = scmp.eq.s32.totalorder %s31, 0
      %p84 = por %p82, %p83
      %s86 = sadd.s32 %s85, 1
      %p89 = scmp.eq.s32.totalorder %s25, 1
      %p90 = scmp.ne.s32.totalorder %s85, %s87
      %p91 = scmp.eq.s32.totalorder %s25, 0
      %p92 = por %p90, %p91
      %p93 = scmp.ne.s32.totalorder %s85, %s87
      %p94 = scmp.eq.s32.totalorder %s30, 1
      %p95 = por %p93, %p94
      %p96 = scmp.ne.s32.totalorder %s87, %s88
      %p97 = scmp.eq.s32.totalorder %s30, 0
      %p98 = por %p96, %p97
      %p99 = scmp.ne.s32.totalorder %s87, %s88
      %p100 = scmp.eq.s32.totalorder %s31, 1
      %p101 = por %p99, %p100
      %p103 = scmp.ne.s32.totalorder %s88, %s102
      %p104 = scmp.eq.s32.totalorder %s31, 0
      %p105 = por %p103, %p104
      %s107 = sadd.s32 %s106, 1
      %p110 = scmp.eq.s32.totalorder %s25, 1
      %p111 = scmp.ne.s32.totalorder %s106, %s108
      %p112 = scmp.eq.s32.totalorder %s25, 0
      %p113 = por %p111, %p112
      %p114 = scmp.ne.s32.totalorder %s106, %s108
      %p115 = scmp.eq.s32.totalorder %s30, 1
      %p116 = por %p114, %p115
      %p117 = scmp.ne.s32.totalorder %s108, %s109
      %p118 = scmp.eq.s32.totalorder %s30, 0
      %p119 = por %p117, %p118
      %p120 = scmp.ne.s32.totalorder %s108, %s109
      %p121 = scmp.eq.s32.totalorder %s31, 1
      %p122 = por %p120, %p121
      %p124 = scmp.ne.s32.totalorder %s109, %s123
      %p125 = scmp.eq.s32.totalorder %s31, 0
      %p126 = por %p124, %p125
      %s128 = sadd.s32 %s127, 1
      %p131 = scmp.eq.s32.totalorder %s25, 1
      %p132 = scmp.ne.s32.totalorder %s127, %s129
      %p133 = scmp.eq.s32.totalorder %s25, 0
      %p134 = por %p132, %p133
      %p135 = scmp.ne.s32.totalorder %s127, %s129
      %p136 = scmp.eq.s32.totalorder %s30, 1
      %p137 = por %p135, %p136
      %p138 = scmp.ne.s32.totalorder %s129, %s130
      %p139 = scmp.eq.s32.totalorder %s30, 0
      %p140 = por %p138, %p139
      %p141 = scmp.ne.s32.totalorder %s129, %s130
      %p142 = scmp.eq.s32.totalorder %s31, 1
      %p143 = por %p141, %p142
      %p145 = scmp.ne.s32.totalorder %s130, %s144
      %p146 = scmp.eq.s32.totalorder %s31, 0
      %p147 = por %p145, %p146
      %s149 = sadd.s32 %s148, 1
      %p152 = scmp.eq.s32.totalorder %s25, 1
      %p153 = scmp.ne.s32.totalorder %s148, %s150
      %p154 = scmp.eq.s32.totalorder %s25, 0
      %p155 = por %p153, %p154
      %p156 = scmp.ne.s32.totalorder %s148, %s150
      %p157 = scmp.eq.s32.totalorder %s30, 1
      %p158 = por %p156, %p157
      %p159 = scmp.ne.s32.totalorder %s150, %s151
      %p160 = scmp.eq.s32.totalorder %s30, 0
      %p161 = por %p159, %p160
      %p162 = scmp.ne.s32.totalorder %s150, %s151
      %p163 = scmp.eq.s32.totalorder %s31, 1
      %p164 = por %p162, %p163
      %p166 = scmp.ne.s32.totalorder %s151, %s165
      %p167 = scmp.eq.s32.totalorder %s31, 0
      %p168 = por %p166, %p167
      %s169 = ssub.s32 %s25, %s32
      %p170 = scmp.eq.s32.totalorder %s169, 0
      %s172 = sadd.s32 %s171, 1
      %s173 = scalar_select %p170, %s171, %s172
      %p176 = pneg %p170
      %p177 = scmp.eq.s32.totalorder %s25, 1
      %p178 = por %p176, %p177
      %p179 = scmp.ne.s32.totalorder %s171, %s174
      %p180 = scmp.eq.s32.totalorder %s25, 0
      %p181 = por %p179, %p180
      %p182 = scmp.ne.s32.totalorder %s171, %s174
      %p183 = scmp.eq.s32.totalorder %s30, 1
      %p184 = por %p182, %p183
      %p185 = scmp.ne.s32.totalorder %s174, %s175
      %p186 = scmp.eq.s32.totalorder %s30, 0
      %p187 = por %p185, %p186
      %p188 = scmp.ne.s32.totalorder %s174, %s175
      %p189 = scmp.eq.s32.totalorder %s31, 1
      %p190 = por %p188, %p189
      %p192 = scmp.ne.s32.totalorder %s175, %s191
      %p193 = scmp.eq.s32.totalorder %s31, 0
      %p194 = por %p192, %p193
      %s196 = sadd.s32 %s195, 1
      %p199 = scmp.eq.s32.totalorder %s25, 1
      %p200 = scmp.ne.s32.totalorder %s195, %s197
      %p201 = scmp.eq.s32.totalorder %s25, 0
      %p202 = por %p200, %p201
      %p203 = scmp.ne.s32.totalorder %s195, %s197
      %p204 = scmp.eq.s32.totalorder %s30, 1
      %p205 = por %p203, %p204
      %p206 = scmp.ne.s32.totalorder %s197, %s198
      %p207 = scmp.eq.s32.totalorder %s30, 0
      %p208 = por %p206, %p207
      %p209 = scmp.ne.s32.totalorder %s197, %s198
      %p210 = scmp.eq.s32.totalorder %s31, 1
      %p211 = por %p209, %p210
      %p213 = scmp.ne.s32.totalorder %s198, %s212
      %p214 = scmp.eq.s32.totalorder %s31, 0
      %p215 = por %p213, %p214
      %s217 = sadd.s32 %s216, 1
      %p220 = scmp.eq.s32.totalorder %s25, 1
      %p221 = scmp.ne.s32.totalorder %s216, %s218
      %p222 = scmp.eq.s32.totalorder %s25, 0
      %p223 = por %p221, %p222
      %p224 = scmp.ne.s32.totalorder %s216, %s218
      %p225 = scmp.eq.s32.totalorder %s30, 1
      %p226 = por %p224, %p225
      %p227 = scmp.ne.s32.totalorder %s218, %s219
      %p228 = scmp.eq.s32.totalorder %s30, 0
      %p229 = por %p227, %p228
      %p230 = scmp.ne.s32.totalorder %s218, %s219
      %p231 = scmp.eq.s32.totalorder %s31, 1
      %p232 = por %p230, %p231
      %p234 = scmp.ne.s32.totalorder %s219, %s233
      %p235 = scmp.eq.s32.totalorder %s31, 0
      %p236 = por %p234, %p235
      %s237 = ssub.s32 %s25, %s32
      %p238 = scmp.eq.s32.totalorder %s237, 0
      %s240 = sadd.s32 %s239, 1
      %s241 = scalar_select %p238, %s239, %s240
      %p244 = pneg %p238
      %p245 = scmp.eq.s32.totalorder %s25, 1
      %p246 = por %p244, %p245
      %p247 = scmp.ne.s32.totalorder %s239, %s242
      %p248 = scmp.eq.s32.totalorder %s25, 0
      %p249 = por %p247, %p248
      %p250 = scmp.ne.s32.totalorder %s239, %s242
      %p251 = scmp.eq.s32.totalorder %s30, 1
      %p252 = por %p250, %p251
      %p253 = scmp.ne.s32.totalorder %s242, %s243
      %p254 = scmp.eq.s32.totalorder %s30, 0
      %p255 = por %p253, %p254
      %p256 = scmp.ne.s32.totalorder %s242, %s243
      %p257 = scmp.eq.s32.totalorder %s31, 1
      %p258 = por %p256, %p257
      %p260 = scmp.ne.s32.totalorder %s243, %s259
      %p261 = scmp.eq.s32.totalorder %s31, 0
      %p262 = por %p260, %p261
      %p263 = scmp.le.s32.totalorder 1, %s25
      %p264 = scmp.lt.s32.totalorder %s25, 3
      %p265 = pnand %p263, %p264
      %p266 = pneg %p265
      // Predicated region
      $region9: #{tpu_custom_call.1} parent=5 // pred_check
        _
      $region10: #{tpu_custom_call.1} parent=5 // pred_check_branch
        %268 = sbr.rel (%p265) target = $region12
      $region11: #{tpu_custom_call.1} parent=5 // pred_region
        %s269 = ssub.s32 %s25, 1
        // Predicated region
        $region13: #{tpu_custom_call.1} parent=11 // pred_check
          %p270 = pneg %p98
        $region14: #{tpu_custom_call.1} parent=11 // pred_check_branch
          %272 = sbr.rel (%p270) target = $region16
        $region15: #{tpu_custom_call.1} parent=11 // pred_region
          %s274 = ssub.s32 256, 256
          %275 = vsyncadd [#allocation6], %s274
          %s276 = sshll.u32 [#allocation7], 4
          %s277 = int_to_ptr.vmem [resolvable:$true] %s276
          %282 = dma.hbm_to_vmem [thread:$0]  %s2, 256, %s277, [#allocation6], 64, 64, 4
        $region16: #{tpu_custom_call.1} parent=11 // pred_fallthru
          _
        // Predicated region
        $region17: #{tpu_custom_call.1} parent=11 // pred_check
          %p283 = pneg %p119
        $region18: #{tpu_custom_call.1} parent=11 // pred_check_branch
          %285 = sbr.rel (%p283) target = $region20
        $region19: #{tpu_custom_call.1} parent=11 // pred_region
          _
        $region20: #{tpu_custom_call.1} parent=11 // pred_fallthru
          _
        // Predicated region
        $region21: #{tpu_custom_call.1} parent=11 // pred_check
          %p286 = pneg %p140
        $region22: #{tpu_custom_call.1} parent=11 // pred_check_branch
          %288 = sbr.rel (%p286) target = $region24
        $region23: #{tpu_custom_call.1} parent=11 // pred_region
          %s290 = ssub.s32 256, 256
          %291 = vsyncadd [#allocation9], %s290
          %s292 = sshll.u32 [#allocation8], 4
          %s293 = int_to_ptr.vmem [resolvable:$true] %s292
          %298 = dma.hbm_to_vmem [thread:$0]  %s4, 256, %s293, [#allocation9], 64, 64, 4
        $region24: #{tpu_custom_call.1} parent=11 // pred_fallthru
          _
        // Predicated region
        $region25: #{tpu_custom_call.1} parent=11 // pred_check
          %p299 = pneg %p161
        $region26: #{tpu_custom_call.1} parent=11 // pred_check_branch
          %301 = sbr.rel (%p299) target = $region28
        $region27: #{tpu_custom_call.1} parent=11 // pred_region
          _
        $region28: #{tpu_custom_call.1} parent=11 // pred_fallthru
          _
        // Predicated region
        $region29: #{tpu_custom_call.1} parent=11 // pred_check
          %p302 = pneg %p208
        $region30: #{tpu_custom_call.1} parent=11 // pred_check_branch
          %304 = sbr.rel (%p302) target = $region32
        $region31: #{tpu_custom_call.1} parent=11 // pred_region
          _
        $region32: #{tpu_custom_call.1} parent=11 // pred_fallthru
          _
        // Predicated region
        $region33: #{tpu_custom_call.1} parent=11 // pred_check
          %p305 = pneg %p229
        $region34: #{tpu_custom_call.1} parent=11 // pred_check_branch
          %307 = sbr.rel (%p305) target = $region36
        $region35: #{tpu_custom_call.1} parent=11 // pred_region
          _
        $region36: #{tpu_custom_call.1} parent=11 // pred_fallthru
          _
      $region12: #{tpu_custom_call.1} parent=5 // pred_fallthru
        _
      %p308 = scmp.lt.s32.totalorder %s25, 2
      // Predicated region
      $region37: #{tpu_custom_call.1} parent=5 // pred_check
        %p309 = pneg %p308
      $region38: #{tpu_custom_call.1} parent=5 // pred_check_branch
        %311 = sbr.rel (%p309) target = $region40
      $region39: #{tpu_custom_call.1} parent=5 // pred_region
        // Predicated region
        $region41: #{tpu_custom_call.1} parent=39 // pred_check
          %p312 = pneg %p45
        $region42: #{tpu_custom_call.1} parent=39 // pred_check_branch
          %314 = sbr.rel (%p312) target = $region44
        $region43: #{tpu_custom_call.1} parent=39 // pred_region
          %s315 = sand.u32 %s35, 1
          %s316 = scalar_lea.sflag [#allocation3], %s315
          %s317 = sand.u32 %s35, 1
          %s318 = smul.addr %s317, 8
          %s319 = scalar_lea.vmem [#allocation2], %s318
          %s321 = ssub.s32 128, 128
          %322 = vsyncadd %s316, %s321
          %s323 = smul.addr %s25, 128
          %s324 = scalar_lea.hbm %s0, %s323
          %s326 = sshll.u32 %s319, 4
          %s327 = int_to_ptr.vmem [resolvable:$true] %s326
          %329 = dma.hbm_to_vmem [thread:$0]  %s324, 128, %s327, %s316
        $region44: #{tpu_custom_call.1} parent=39 // pred_fallthru
          _
        // Predicated region
        $region45: #{tpu_custom_call.1} parent=39 // pred_check
          %p330 = pneg %p71
        $region46: #{tpu_custom_call.1} parent=39 // pred_check_branch
          %332 = sbr.rel (%p330) target = $region48
        $region47: #{tpu_custom_call.1} parent=39 // pred_region
          %s333 = sand.u32 %s25, 1
          %s334 = scalar_lea.sflag [#allocation6], %s333
          %s335 = sand.u32 %s61, 1
          %s336 = smul.addr %s335, 8
          %s337 = scalar_lea.vmem [#allocation5], %s336
          %s339 = ssub.s32 128, 128
          %340 = vsyncadd %s334, %s339
          %s341 = smul.addr %s25, 128
          %s342 = scalar_lea.hbm %s1, %s341
          %s344 = sshll.u32 %s337, 4
          %s345 = int_to_ptr.vmem [resolvable:$true] %s344
          %347 = dma.hbm_to_vmem [thread:$0]  %s342, 128, %s345, %s334
        $region48: #{tpu_custom_call.1} parent=39 // pred_fallthru
          _
        // Predicated region
        $region49: #{tpu_custom_call.1} parent=39 // pred_check
          %p348 = pneg %p181
        $region50: #{tpu_custom_call.1} parent=39 // pred_check_branch
          %350 = sbr.rel (%p348) target = $region52
        $region51: #{tpu_custom_call.1} parent=39 // pred_region
          %p351 = scmp.lt.s32.totalorder %s25, 1
          %s352 = scalar_select %p351, %s25, 1
          %s353 = smul.addr %s352, 8
          %s354 = scalar_lea.vmem %s6, %s353
        $region52: #{tpu_custom_call.1} parent=39 // pred_fallthru
          _
      $region40: #{tpu_custom_call.1} parent=5 // pred_fallthru
        _
      %p355 = scmp.le.s32.totalorder 1, %s25
      %p356 = scmp.lt.s32.totalorder %s25, 3
      %p357 = pnand %p355, %p356
      %p358 = pneg %p357
      // Predicated region
      $region53: #{tpu_custom_call.1} parent=5 // pred_check
        _
      $region54: #{tpu_custom_call.1} parent=5 // pred_check_branch
        %360 = sbr.rel (%p357) target = $region56
      $region55: #{tpu_custom_call.1} parent=5 // pred_region
        %s361 = ssub.s32 %s25, 1
        %s362 = sand.u32 %s38, 1
        %s363 = scalar_lea.sflag [#allocation3], %s362
        %s364 = sand.u32 %s38, 1
        %s365 = smul.addr %s364, 8
        %s366 = scalar_lea.vmem [#allocation2], %s365
        // Predicated region
        $region57: #{tpu_custom_call.1} parent=55 // pred_check
          %p367 = pneg %p51
        $region58: #{tpu_custom_call.1} parent=55 // pred_check_branch
          %369 = sbr.rel (%p367) target = $region60
        $region59: #{tpu_custom_call.1} parent=55 // pred_region
          %370 = dma.done %s363, 128
        $region60: #{tpu_custom_call.1} parent=55 // pred_fallthru
          _
        %s371 = sand.u32 %s30, 1
        %s372 = scalar_lea.sflag [#allocation6], %s371
        %s373 = sand.u32 %s64, 1
        %s374 = smul.addr %s373, 8
        %s375 = scalar_lea.vmem [#allocation5], %s374
        // Predicated region
        $region61: #{tpu_custom_call.1} parent=55 // pred_check
          %p376 = pneg %p77
        $region62: #{tpu_custom_call.1} parent=55 // pred_check_branch
          %378 = sbr.rel (%p376) target = $region64
        $region63: #{tpu_custom_call.1} parent=55 // pred_region
          %379 = dma.done %s372, 128
        $region64: #{tpu_custom_call.1} parent=55 // pred_fallthru
          _
        // Predicated region
        $region65: #{tpu_custom_call.1} parent=55 // pred_check
          %p380 = pneg %p98
        $region66: #{tpu_custom_call.1} parent=55 // pred_check_branch
          %382 = sbr.rel (%p380) target = $region68
        $region67: #{tpu_custom_call.1} parent=55 // pred_region
          %383 = dma.done [#allocation6], 256
        $region68: #{tpu_custom_call.1} parent=55 // pred_fallthru
          _
        // Predicated region
        $region69: #{tpu_custom_call.1} parent=55 // pred_check
          %p384 = pneg %p140
        $region70: #{tpu_custom_call.1} parent=55 // pred_check_branch
          %386 = sbr.rel (%p384) target = $region72
        $region71: #{tpu_custom_call.1} parent=55 // pred_region
          %387 = dma.done [#allocation9], 256
        $region72: #{tpu_custom_call.1} parent=55 // pred_fallthru
          _
        %s388 = sand.u32 %s38, 1
        %s389 = scalar_lea.sflag [#allocation3], %s388
        %s390 = sand.u32 %s38, 1
        %s391 = smul.addr %s390, 8
        %s392 = scalar_lea.vmem [#allocation2], %s391
        %p393 = pneg %p51
        %p394 = pneg %p48
        %s395 = sand.u32 %s30, 1
        %s396 = scalar_lea.sflag [#allocation6], %s395
        %s397 = sand.u32 %s64, 1
        %s398 = smul.addr %s397, 8
        %s399 = scalar_lea.vmem [#allocation5], %s398
        %p400 = pneg %p77
        %p401 = pneg %p74
        %p402 = pneg %p98
        %p403 = pneg %p95
        %p404 = pneg %p119
        %p405 = pneg %p116
        %p406 = pneg %p140
        %p407 = pneg %p137
        %p408 = pneg %p161
        %p409 = pneg %p158
        %p410 = scmp.lt.s32.totalorder %s30, 1
        %s411 = scalar_select %p410, %s30, 1
        %s412 = smul.addr %s411, 8
        %s413 = scalar_lea.vmem %s6, %s412
        %p414 = pneg %p187
        %p415 = pneg %p184
        %p416 = pneg %p208
        %p417 = pneg %p205
        %p418 = pneg %p229
        %p419 = pneg %p226
        %p420 = pneg %p255
        %p421 = pneg %p252
        %s422 = sand.u32 %s242, 1
        %s423 = scalar_lea.sflag [#allocation4], %s422
        %s424 = sand.u32 %s242, 1
        %s425 = smul.addr %s424, 8
        %s426 = scalar_lea.vmem [#allocation10], %s425
        %p427 = scmp.lt.s32.totalorder %s30, 1
        %s428 = scalar_select %p427, %s30, 1
        %s429 = smul.addr %s428, 8
        %s430 = scalar_lea.vmem %s6, %s429
        %v432 = vld [vmem:[%s3] sm:$0x1]
        %v433 = vld [vmem:[%s5] sm:$0x1]
        %v434 = vld [vmem:[%s430] sm:$0xff]
        %v435 = vld [vmem:[%s7] sm:$0x1]
        %v436 = vld [vmem:[%s8] sm:$0x1]
        %v437 = vld [vmem:[%s366] sm:$0xff]
        %v438 = vld [vmem:[%s375] sm:$0xff]
        %v439 = vpack.c.bf16 %v437, %v437
        %v440 = vld [vmem:[#allocation7] sm:$0xf]
        %v441 = vld [vmem:[#allocation7 + $0x4] sm:$0xf]
        %v442 = vld [vmem:[#allocation7 + $0x8] sm:$0xf]
        %v443 = vld [vmem:[#allocation7 + $0xc] sm:$0xf]
        %v445 = vlaneseq
        %v446 = vshrl.u32 %v445, 7
        %v447 = vsub.s32 0, %v446
        %v448 = vrot.slane %v432, %v447
        %v454 = vunpack.c.l.b16 %v440
        %v455 = vunpack.c.l.b16 %v441
        %v456 = vunpack.c.l.b16 %v442
        %v457 = vunpack.c.l.b16 %v443
        %v458 = vpack.c.b16 %v455, %v454
        %v459 = vpack.c.b16 %v457, %v456
        %vm462 = vcmask 261120
        %v464 = vsel %vm462, %v439, 0
        %466 = vmatprep.subr.bf16.mxu0 0
        %467 = vmatpush1.bf16.msra.mxu0 %v458
        %468 = vmatprep.subr.bf16.mxu0 0
        %469 = vmatpush1.bf16.msra.mxu0 %v459
        %470 = vmatprep.subr.bf16.mxu0 0
        %471 = vmatpush1.bf16.msra.mxu0 0
        %472 = vmatprep.subr.bf16.mxu0 0
        %473 = vmatpush1.bf16.msra.mxu0 0
        %474 = vmatprep.subr.bf16.mxu0 0
        %475 = vmatpush1.bf16.msra.mxu0 0
        %476 = vmatprep.subr.bf16.mxu0 0
        %477 = vmatpush1.bf16.msra.mxu0 0
        %478 = vmatprep.subr.bf16.mxu0 0
        %479 = vmatpush1.bf16.msra.mxu0 0
        %480 = vmatprep.subr.bf16.mxu0 0
        %481 = vmatpush1.bf16.msra.mxu0 0
        %482 = vmatprep.subr.bf16.mxu0 0
        %483 = vmatpush1.bf16.msra.mxu0 0
        %484 = vmatprep.subr.bf16.mxu0 0
        %485 = vmatpush1.bf16.msra.mxu0 0
        %486 = vmatprep.subr.bf16.mxu0 0
        %487 = vmatpush1.bf16.msra.mxu0 0
        %488 = vmatprep.subr.bf16.mxu0 0
        %489 = vmatpush1.bf16.msra.mxu0 0
        %490 = vmatprep.subr.bf16.mxu0 0
        %491 = vmatpush1.bf16.msra.mxu0 0
        %492 = vmatprep.subr.bf16.mxu0 0
        %493 = vmatpush1.bf16.msra.mxu0 0
        %494 = vmatprep.subr.bf16.mxu0 0
        %495 = vmatpush1.bf16.msra.mxu0 0
        %496 = vmatprep.subr.bf16.mxu0 0
        %497 = vmatpush1.bf16.msra.mxu0 0
        %498 = vmatprep.mubr.bf16.mxu0 0
        %499 = vmatmul.mubr.bf16.gmra.mrb[0].mxu0 %v464
        %v500 = vpop.f32.mrb[0].mxu0
        %v501 = vadd.f32 %v448, %v500
        %v502 = vpop.f32.mrb[0].mxu0
        %v503 = vpop.f32.mrb[0].mxu0
        %v504 = vpop.f32.mrb[0].mxu0
        %505 = vdwg.mxu0
        %v506 = vpack.c.bf16 %v438, %v438
        %507 = vrot.lane.b32.xlu0 %v458, 64
        %v508 = vpop.permute.xlu0 %507
        %509 = vrot.lane.b32.xlu0 %v459, 64
        %v510 = vpop.permute.xlu0 %509
        %513 = vrot.lane.b32.xlu0 %v448, 64
        %v514 = vpop.permute.xlu0 %513
        %v517 = vsel %vm462, %v506, 0
        %519 = vmatprep.subr.bf16.mxu0 0
        %520 = vmatpush1.bf16.msra.mxu0 %v508
        %521 = vmatprep.subr.bf16.mxu0 0
        %522 = vmatpush1.bf16.msra.mxu0 %v510
        %523 = vmatprep.subr.bf16.mxu0 0
        %524 = vmatpush1.bf16.msra.mxu0 0
        %525 = vmatprep.subr.bf16.mxu0 0
        %526 = vmatpush1.bf16.msra.mxu0 0
        %527 = vmatprep.subr.bf16.mxu0 0
        %528 = vmatpush1.bf16.msra.mxu0 0
        %529 = vmatprep.subr.bf16.mxu0 0
        %530 = vmatpush1.bf16.msra.mxu0 0
        %531 = vmatprep.subr.bf16.mxu0 0
        %532 = vmatpush1.bf16.msra.mxu0 0
        %533 = vmatprep.subr.bf16.mxu0 0
        %534 = vmatpush1.bf16.msra.mxu0 0
        %535 = vmatprep.subr.bf16.mxu0 0
        %536 = vmatpush1.bf16.msra.mxu0 0
        %537 = vmatprep.subr.bf16.mxu0 0
        %538 = vmatpush1.bf16.msra.mxu0 0
        %539 = vmatprep.subr.bf16.mxu0 0
        %540 = vmatpush1.bf16.msra.mxu0 0
        %541 = vmatprep.subr.bf16.mxu0 0
        %542 = vmatpush1.bf16.msra.mxu0 0
        %543 = vmatprep.subr.bf16.mxu0 0
        %544 = vmatpush1.bf16.msra.mxu0 0
        %545 = vmatprep.subr.bf16.mxu0 0
        %546 = vmatpush1.bf16.msra.mxu0 0
        %547 = vmatprep.subr.bf16.mxu0 0
        %548 = vmatpush1.bf16.msra.mxu0 0
        %549 = vmatprep.subr.bf16.mxu0 0
        %550 = vmatpush1.bf16.msra.mxu0 0
        %551 = vmatprep.mubr.bf16.mxu0 0
        %552 = vmatmul.mubr.bf16.gmra.mrb[0].mxu0 %v517
        %v553 = vpop.f32.mrb[0].mxu0
        %v554 = vadd.f32 %v514, %v553
        %v555 = vpop.f32.mrb[0].mxu0
        %v556 = vpop.f32.mrb[0].mxu0
        %v557 = vpop.f32.mrb[0].mxu0
        %558 = vdwg.mxu0
        %v559 = vmul.f32 %v501, 0.35355338
        %v560 = vpack.c.bf16 %v559, %v559
        %v561 = vpack.c.bf16 %v501, %v501
        %v562 = vpack.c.bf16 %v554, %v554
        %564 = vrot.lane.b32.xlu0 %v561, 96
        %v565 = vpop.permute.xlu0 %564
        %vm566 = vcmask 64512
        %v568 = vsel %vm566, %v560, 0
        %v571 = vsel %vm566, %v565, 0
        %573 = vmatprep.subr.bf16.mxu0 0
        %574 = vmatpush1.bf16.xpose.msra.mxu0 %v571
        %575 = vmatprep.subr.bf16.mxu0 0
        %576 = vmatpush1.bf16.xpose.msra.mxu0 0
        %577 = vmatprep.subr.bf16.mxu0 0
        %578 = vmatpush1.bf16.xpose.msra.mxu0 0
        %579 = vmatprep.subr.bf16.mxu0 0
        %580 = vmatpush1.bf16.xpose.msra.mxu0 0
        %581 = vmatprep.subr.bf16.mxu0 0
        %582 = vmatpush1.bf16.xpose.msra.mxu0 0
        %583 = vmatprep.subr.bf16.mxu0 0
        %584 = vmatpush1.bf16.xpose.msra.mxu0 0
        %585 = vmatprep.subr.bf16.mxu0 0
        %586 = vmatpush1.bf16.xpose.msra.mxu0 0
        %587 = vmatprep.subr.bf16.mxu0 0
        %588 = vmatpush1.bf16.xpose.msra.mxu0 0
        %589 = vmatprep.subr.bf16.mxu0 0
        %590 = vmatpush1.bf16.xpose.msra.mxu0 0
        %591 = vmatprep.subr.bf16.mxu0 0
        %592 = vmatpush1.bf16.xpose.msra.mxu0 0
        %593 = vmatprep.subr.bf16.mxu0 0
        %594 = vmatpush1.bf16.xpose.msra.mxu0 0
        %595 = vmatprep.subr.bf16.mxu0 0
        %596 = vmatpush1.bf16.xpose.msra.mxu0 0
        %597 = vmatprep.subr.bf16.mxu0 0
        %598 = vmatpush1.bf16.xpose.msra.mxu0 0
        %599 = vmatprep.subr.bf16.mxu0 0
        %600 = vmatpush1.bf16.xpose.msra.mxu0 0
        %601 = vmatprep.subr.bf16.mxu0 0
        %602 = vmatpush1.bf16.xpose.msra.mxu0 0
        %603 = vmatprep.subr.bf16.mxu0 0
        %604 = vmatpush1.bf16.xpose.msra.mxu0 0
        %605 = vmatprep.mubr.bf16.mxu0 0
        %606 = vmatmul.mubr.bf16.gmra.mrb[0].mxu0 %v568
        %v607 = vpop.f32.mrb[0].mxu0
        %v608 = vadd.f32 0.0, %v607
        %v609 = vpop.f32.mrb[0].mxu0
        %v610 = vpop.f32.mrb[0].mxu0
        %v611 = vpop.f32.mrb[0].mxu0
        %612 = vdwg.mxu0
        %v613 = vsel %vm566, %v608, -inf
        %614 = vmax.xlane.f32.xlu0 %v613
        %v615 = vpop.xlane.xlu0 %614
        %v616 = vsub.f32 %v608, %v615
        %v617 = vmul.f32 %v616, 1.442695
        %v618 = vpow.pop %v617
        %v619 = vsel %vm566, %v618, 0.0
        %620 = vadd.xlane.f32.xlu0 %v619
        %v621 = vpop.xlane.xlu0 %620
        %v622 = vrcp.pop %v621
        %v623 = vmul.f32 %v618, %v622
        %v624 = vpack.c.bf16 %v623, %v623
        %v626 = vsel %vm566, %v624, 0
        %vm628 = vcmask 1043456
        %v630 = vsel %vm628, %v562, 0
        %632 = vmatprep.subr.bf16.mxu0 0
        %633 = vmatpush1.bf16.msra.mxu0 %v630
        %634 = vmatprep.subr.bf16.mxu0 0
        %635 = vmatpush1.bf16.msra.mxu0 0
        %636 = vmatprep.subr.bf16.mxu0 0
        %637 = vmatpush1.bf16.msra.mxu0 0
        %638 = vmatprep.subr.bf16.mxu0 0
        %639 = vmatpush1.bf16.msra.mxu0 0
        %640 = vmatprep.subr.bf16.mxu0 0
        %641 = vmatpush1.bf16.msra.mxu0 0
        %642 = vmatprep.subr.bf16.mxu0 0
        %643 = vmatpush1.bf16.msra.mxu0 0
        %644 = vmatprep.subr.bf16.mxu0 0
        %645 = vmatpush1.bf16.msra.mxu0 0
        %646 = vmatprep.subr.bf16.mxu0 0
        %647 = vmatpush1.bf16.msra.mxu0 0
        %648 = vmatprep.subr.bf16.mxu0 0
        %649 = vmatpush1.bf16.msra.mxu0 0
        %650 = vmatprep.subr.bf16.mxu0 0
        %651 = vmatpush1.bf16.msra.mxu0 0
        %652 = vmatprep.subr.bf16.mxu0 0
        %653 = vmatpush1.bf16.msra.mxu0 0
        %654 = vmatprep.subr.bf16.mxu0 0
        %655 = vmatpush1.bf16.msra.mxu0 0
        %656 = vmatprep.subr.bf16.mxu0 0
        %657 = vmatpush1.bf16.msra.mxu0 0
        %658 = vmatprep.subr.bf16.mxu0 0
        %659 = vmatpush1.bf16.msra.mxu0 0
        %660 = vmatprep.subr.bf16.mxu0 0
        %661 = vmatpush1.bf16.msra.mxu0 0
        %662 = vmatprep.subr.bf16.mxu0 0
        %663 = vmatpush1.bf16.msra.mxu0 0
        %664 = vmatprep.mubr.bf16.mxu0 0
        %665 = vmatmul.mubr.bf16.gmra.mrb[0].mxu0 %v626
        %v666 = vpop.f32.mrb[0].mxu0
        %v667 = vadd.f32 0.0, %v666
        %v668 = vpop.f32.mrb[0].mxu0
        %v669 = vpop.f32.mrb[0].mxu0
        %v670 = vpop.f32.mrb[0].mxu0
        %671 = vdwg.mxu0
        %v672 = vpack.c.bf16 %v667, %v667
        %v673 = vld [vmem:[#allocation8] sm:$0xf]
        %675 = vrot.lane.b32.xlu0 %v560, 120
        %v676 = vpop.permute.xlu0 %675
        %677 = vrot.lane.b32.xlu0 %v561, 88
        %v678 = vpop.permute.xlu0 %677
        %v680 = vsel %vm566, %v676, 0
        %v683 = vsel %vm566, %v678, 0
        %685 = vmatprep.subr.bf16.mxu0 0
        %686 = vmatpush1.bf16.xpose.msra.mxu0 %v683
        %687 = vmatprep.subr.bf16.mxu0 0
        %688 = vmatpush1.bf16.xpose.msra.mxu0 0
        %689 = vmatprep.subr.bf16.mxu0 0
        %690 = vmatpush1.bf16.xpose.msra.mxu0 0
        %691 = vmatprep.subr.bf16.mxu0 0
        %692 = vmatpush1.bf16.xpose.msra.mxu0 0
        %693 = vmatprep.subr.bf16.mxu0 0
        %694 = vmatpush1.bf16.xpose.msra.mxu0 0
        %695 = vmatprep.subr.bf16.mxu0 0
        %696 = vmatpush1.bf16.xpose.msra.mxu0 0
        %697 = vmatprep.subr.bf16.mxu0 0
        %698 = vmatpush1.bf16.xpose.msra.mxu0 0
        %699 = vmatprep.subr.bf16.mxu0 0
        %700 = vmatpush1.bf16.xpose.msra.mxu0 0
        %701 = vmatprep.subr.bf16.mxu0 0
        %702 = vmatpush1.bf16.xpose.msra.mxu0 0
        %703 = vmatprep.subr.bf16.mxu0 0
        %704 = vmatpush1.bf16.xpose.msra.mxu0 0
        %705 = vmatprep.subr.bf16.mxu0 0
        %706 = vmatpush1.bf16.xpose.msra.mxu0 0
        %707 = vmatprep.subr.bf16.mxu0 0
        %708 = vmatpush1.bf16.xpose.msra.mxu0 0
        %709 = vmatprep.subr.bf16.mxu0 0
        %710 = vmatpush1.bf16.xpose.msra.mxu0 0
        %711 = vmatprep.subr.bf16.mxu0 0
        %712 = vmatpush1.bf16.xpose.msra.mxu0 0
        %713 = vmatprep.subr.bf16.mxu0 0
        %714 = vmatpush1.bf16.xpose.msra.mxu0 0
        %715 = vmatprep.subr.bf16.mxu0 0
        %716 = vmatpush1.bf16.xpose.msra.mxu0 0
        %717 = vmatprep.mubr.bf16.mxu0 0
        %718 = vmatmul.mubr.bf16.gmra.mrb[0].mxu0 %v680
        %v719 = vpop.f32.mrb[0].mxu0
        %v720 = vadd.f32 0.0, %v719
        %v721 = vpop.f32.mrb[0].mxu0
        %v722 = vpop.f32.mrb[0].mxu0
        %v723 = vpop.f32.mrb[0].mxu0
        %724 = vdwg.mxu0
        %v725 = vsel %vm566, %v720, -inf
        %726 = vmax.xlane.f32.xlu0 %v725
        %v727 = vpop.xlane.xlu0 %726
        %v728 = vsub.f32 %v720, %v727
        %v729 = vmul.f32 %v728, 1.442695
        %v730 = vpow.pop %v729
        %v731 = vsel %vm566, %v730, 0.0
        %732 = vadd.xlane.f32.xlu0 %v731
        %v733 = vpop.xlane.xlu0 %732
        %v734 = vrcp.pop %v733
        %v735 = vmul.f32 %v730, %v734
        %v736 = vpack.c.bf16 %v735, %v735
        %738 = vrot.lane.b32.xlu0 %v562, 120
        %v739 = vpop.permute.xlu0 %738
        %v741 = vsel %vm566, %v736, 0
        %v744 = vsel %vm628, %v739, 0
        %746 = vmatprep.subr.bf16.mxu0 0
        %747 = vmatpush1.bf16.msra.mxu0 %v744
        %748 = vmatprep.subr.bf16.mxu0 0
        %749 = vmatpush1.bf16.msra.mxu0 0
        %750 = vmatprep.subr.bf16.mxu0 0
        %751 = vmatpush1.bf16.msra.mxu0 0
        %752 = vmatprep.subr.bf16.mxu0 0
        %753 = vmatpush1.bf16.msra.mxu0 0
        %754 = vmatprep.subr.bf16.mxu0 0
        %755 = vmatpush1.bf16.msra.mxu0 0
        %756 = vmatprep.subr.bf16.mxu0 0
        %757 = vmatpush1.bf16.msra.mxu0 0
        %758 = vmatprep.subr.bf16.mxu0 0
        %759 = vmatpush1.bf16.msra.mxu0 0
        %760 = vmatprep.subr.bf16.mxu0 0
        %761 = vmatpush1.bf16.msra.mxu0 0
        %762 = vmatprep.subr.bf16.mxu0 0
        %763 = vmatpush1.bf16.msra.mxu0 0
        %764 = vmatprep.subr.bf16.mxu0 0
        %765 = vmatpush1.bf16.msra.mxu0 0
        %766 = vmatprep.subr.bf16.mxu0 0
        %767 = vmatpush1.bf16.msra.mxu0 0
        %768 = vmatprep.subr.bf16.mxu0 0
        %769 = vmatpush1.bf16.msra.mxu0 0
        %770 = vmatprep.subr.bf16.mxu0 0
        %771 = vmatpush1.bf16.msra.mxu0 0
        %772 = vmatprep.subr.bf16.mxu0 0
        %773 = vmatpush1.bf16.msra.mxu0 0
        %774 = vmatprep.subr.bf16.mxu0 0
        %775 = vmatpush1.bf16.msra.mxu0 0
        %776 = vmatprep.subr.bf16.mxu0 0
        %777 = vmatpush1.bf16.msra.mxu0 0
        %778 = vmatprep.mubr.bf16.mxu0 0
        %779 = vmatmul.mubr.bf16.gmra.mrb[0].mxu0 %v741
        %v780 = vpop.f32.mrb[0].mxu0
        %v781 = vadd.f32 0.0, %v780
        %v782 = vpop.f32.mrb[0].mxu0
        %v783 = vpop.f32.mrb[0].mxu0
        %v784 = vpop.f32.mrb[0].mxu0
        %785 = vdwg.mxu0
        %v786 = vpack.c.bf16 %v781, %v781
        %v787 = vld [vmem:[#allocation8 + $0x4] sm:$0xf]
        %v789 = vsel %vm566, %v786, 0
        %v792 = vsel %vm628, %v787, 0
        %794 = vmatprep.subr.bf16.mxu0 0
        %795 = vmatpush1.bf16.msra.mxu0 %v792
        %796 = vmatprep.subr.bf16.mxu0 0
        %797 = vmatpush1.bf16.msra.mxu0 0
        %798 = vmatprep.subr.bf16.mxu0 0
        %799 = vmatpush1.bf16.msra.mxu0 0
        %800 = vmatprep.subr.bf16.mxu0 0
        %801 = vmatpush1.bf16.msra.mxu0 0
        %802 = vmatprep.subr.bf16.mxu0 0
        %803 = vmatpush1.bf16.msra.mxu0 0
        %804 = vmatprep.subr.bf16.mxu0 0
        %805 = vmatpush1.bf16.msra.mxu0 0
        %806 = vmatprep.subr.bf16.mxu0 0
        %807 = vmatpush1.bf16.msra.mxu0 0
        %808 = vmatprep.subr.bf16.mxu0 0
        %809 = vmatpush1.bf16.msra.mxu0 0
        %810 = vmatprep.subr.bf16.mxu0 0
        %811 = vmatpush1.bf16.msra.mxu0 0
        %812 = vmatprep.subr.bf16.mxu0 0
        %813 = vmatpush1.bf16.msra.mxu0 0
        %814 = vmatprep.subr.bf16.mxu0 0
        %815 = vmatpush1.bf16.msra.mxu0 0
        %816 = vmatprep.subr.bf16.mxu0 0
        %817 = vmatpush1.bf16.msra.mxu0 0
        %818 = vmatprep.subr.bf16.mxu0 0
        %819 = vmatpush1.bf16.msra.mxu0 0
        %820 = vmatprep.subr.bf16.mxu0 0
        %821 = vmatpush1.bf16.msra.mxu0 0
        %822 = vmatprep.subr.bf16.mxu0 0
        %823 = vmatpush1.bf16.msra.mxu0 0
        %824 = vmatprep.subr.bf16.mxu0 0
        %825 = vmatpush1.bf16.msra.mxu0 0
        %826 = vmatprep.mubr.bf16.mxu0 0
        %827 = vmatmul.mubr.bf16.gmra.mrb[0].mxu0 %v789
        %v828 = vpop.f32.mrb[0].mxu0
        %v829 = vadd.f32 0.0, %v828
        %v830 = vpop.f32.mrb[0].mxu0
        %v831 = vpop.f32.mrb[0].mxu0
        %v832 = vpop.f32.mrb[0].mxu0
        %833 = vdwg.mxu0
        %v835 = vsel %vm566, %v672, 0
        %v838 = vsel %vm628, %v673, 0
        %840 = vmatprep.subr.bf16.mxu0 0
        %841 = vmatpush1.bf16.msra.mxu0 %v838
        %842 = vmatprep.subr.bf16.mxu0 0
        %843 = vmatpush1.bf16.msra.mxu0 0
        %844 = vmatprep.subr.bf16.mxu0 0
        %845 = vmatpush1.bf16.msra.mxu0 0
        %846 = vmatprep.subr.bf16.mxu0 0
        %847 = vmatpush1.bf16.msra.mxu0 0
        %848 = vmatprep.subr.bf16.mxu0 0
        %849 = vmatpush1.bf16.msra.mxu0 0
        %850 = vmatprep.subr.bf16.mxu0 0
        %851 = vmatpush1.bf16.msra.mxu0 0
        %852 = vmatprep.subr.bf16.mxu0 0
        %853 = vmatpush1.bf16.msra.mxu0 0
        %854 = vmatprep.subr.bf16.mxu0 0
        %855 = vmatpush1.bf16.msra.mxu0 0
        %856 = vmatprep.subr.bf16.mxu0 0
        %857 = vmatpush1.bf16.msra.mxu0 0
        %858 = vmatprep.subr.bf16.mxu0 0
        %859 = vmatpush1.bf16.msra.mxu0 0
        %860 = vmatprep.subr.bf16.mxu0 0
        %861 = vmatpush1.bf16.msra.mxu0 0
        %862 = vmatprep.subr.bf16.mxu0 0
        %863 = vmatpush1.bf16.msra.mxu0 0
        %864 = vmatprep.subr.bf16.mxu0 0
        %865 = vmatpush1.bf16.msra.mxu0 0
        %866 = vmatprep.subr.bf16.mxu0 0
        %867 = vmatpush1.bf16.msra.mxu0 0
        %868 = vmatprep.subr.bf16.mxu0 0
        %869 = vmatpush1.bf16.msra.mxu0 0
        %870 = vmatprep.subr.bf16.mxu0 0
        %871 = vmatpush1.bf16.msra.mxu0 0
        %872 = vmatprep.mubr.bf16.mxu0 0
        %873 = vmatmul.mubr.bf16.gmra.mrb[0].mxu0 %v835
        %v874 = vpop.f32.mrb[0].mxu0
        %v875 = vadd.f32 %v829, %v874
        %v876 = vpop.f32.mrb[0].mxu0
        %v877 = vpop.f32.mrb[0].mxu0
        %v878 = vpop.f32.mrb[0].mxu0
        %879 = vdwg.mxu0
        %880 = vrot.lane.b32.xlu0 %v560, 112
        %v881 = vpop.permute.xlu0 %880
        %882 = vrot.lane.b32.xlu0 %v561, 80
        %v883 = vpop.permute.xlu0 %882
        %v885 = vsel %vm566, %v881, 0
        %v888 = vsel %vm566, %v883, 0
        %890 = vmatprep.subr.bf16.mxu0 0
        %891 = vmatpush1.bf16.xpose.msra.mxu0 %v888
        %892 = vmatprep.subr.bf16.mxu0 0
        %893 = vmatpush1.bf16.xpose.msra.mxu0 0
        %894 = vmatprep.subr.bf16.mxu0 0
        %895 = vmatpush1.bf16.xpose.msra.mxu0 0
        %896 = vmatprep.subr.bf16.mxu0 0
        %897 = vmatpush1.bf16.xpose.msra.mxu0 0
        %898 = vmatprep.subr.bf16.mxu0 0
        %899 = vmatpush1.bf16.xpose.msra.mxu0 0
        %900 = vmatprep.subr.bf16.mxu0 0
        %901 = vmatpush1.bf16.xpose.msra.mxu0 0
        %902 = vmatprep.subr.bf16.mxu0 0
        %903 = vmatpush1.bf16.xpose.msra.mxu0 0
        %904 = vmatprep.subr.bf16.mxu0 0
        %905 = vmatpush1.bf16.xpose.msra.mxu0 0
        %906 = vmatprep.subr.bf16.mxu0 0
        %907 = vmatpush1.bf16.xpose.msra.mxu0 0
        %908 = vmatprep.subr.bf16.mxu0 0
        %909 = vmatpush1.bf16.xpose.msra.mxu0 0
        %910 = vmatprep.subr.bf16.mxu0 0
        %911 = vmatpush1.bf16.xpose.msra.mxu0 0
        %912 = vmatprep.subr.bf16.mxu0 0
        %913 = vmatpush1.bf16.xpose.msra.mxu0 0
        %914 = vmatprep.subr.bf16.mxu0 0
        %915 = vmatpush1.bf16.xpose.msra.mxu0 0
        %916 = vmatprep.subr.bf16.mxu0 0
        %917 = vmatpush1.bf16.xpose.msra.mxu0 0
        %918 = vmatprep.subr.bf16.mxu0 0
        %919 = vmatpush1.bf16.xpose.msra.mxu0 0
        %920 = vmatprep.subr.bf16.mxu0 0
        %921 = vmatpush1.bf16.xpose.msra.mxu0 0
        %922 = vmatprep.mubr.bf16.mxu0 0
        %923 = vmatmul.mubr.bf16.gmra.mrb[0].mxu0 %v885
        %v924 = vpop.f32.mrb[0].mxu0
        %v925 = vadd.f32 0.0, %v924
        %v926 = vpop.f32.mrb[0].mxu0
        %v927 = vpop.f32.mrb[0].mxu0
        %v928 = vpop.f32.mrb[0].mxu0
        %929 = vdwg.mxu0
        %v930 = vsel %vm566, %v925, -inf
        %931 = vmax.xlane.f32.xlu0 %v930
        %v932 = vpop.xlane.xlu0 %931
        %v933 = vsub.f32 %v925, %v932
        %v934 = vmul.f32 %v933, 1.442695
        %v935 = vpow.pop %v934
        %v936 = vsel %vm566, %v935, 0.0
        %937 = vadd.xlane.f32.xlu0 %v936
        %v938 = vpop.xlane.xlu0 %937
        %v939 = vrcp.pop %v938
        %v940 = vmul.f32 %v935, %v939
        %v941 = vpack.c.bf16 %v940, %v940
        %942 = vrot.lane.b32.xlu0 %v562, 112
        %v943 = vpop.permute.xlu0 %942
        %v945 = vsel %vm566, %v941, 0
        %v948 = vsel %vm628, %v943, 0
        %950 = vmatprep.subr.bf16.mxu0 0
        %951 = vmatpush1.bf16.msra.mxu0 %v948
        %952 = vmatprep.subr.bf16.mxu0 0
        %953 = vmatpush1.bf16.msra.mxu0 0
        %954 = vmatprep.subr.bf16.mxu0 0
        %955 = vmatpush1.bf16.msra.mxu0 0
        %956 = vmatprep.subr.bf16.mxu0 0
        %957 = vmatpush1.bf16.msra.mxu0 0
        %958 = vmatprep.subr.bf16.mxu0 0
        %959 = vmatpush1.bf16.msra.mxu0 0
        %960 = vmatprep.subr.bf16.mxu0 0
        %961 = vmatpush1.bf16.msra.mxu0 0
        %962 = vmatprep.subr.bf16.mxu0 0
        %963 = vmatpush1.bf16.msra.mxu0 0
        %964 = vmatprep.subr.bf16.mxu0 0
        %965 = vmatpush1.bf16.msra.mxu0 0
        %966 = vmatprep.subr.bf16.mxu0 0
        %967 = vmatpush1.bf16.msra.mxu0 0
        %968 = vmatprep.subr.bf16.mxu0 0
        %969 = vmatpush1.bf16.msra.mxu0 0
        %970 = vmatprep.subr.bf16.mxu0 0
        %971 = vmatpush1.bf16.msra.mxu0 0
        %972 = vmatprep.subr.bf16.mxu0 0
        %973 = vmatpush1.bf16.msra.mxu0 0
        %974 = vmatprep.subr.bf16.mxu0 0
        %975 = vmatpush1.bf16.msra.mxu0 0
        %976 = vmatprep.subr.bf16.mxu0 0
        %977 = vmatpush1.bf16.msra.mxu0 0
        %978 = vmatprep.subr.bf16.mxu0 0
        %979 = vmatpush1.bf16.msra.mxu0 0
        %980 = vmatprep.subr.bf16.mxu0 0
        %981 = vmatpush1.bf16.msra.mxu0 0
        %982 = vmatprep.mubr.bf16.mxu0 0
        %983 = vmatmul.mubr.bf16.gmra.mrb[0].mxu0 %v945
        %v984 = vpop.f32.mrb[0].mxu0
        %v985 = vadd.f32 0.0, %v984
        %v986 = vpop.f32.mrb[0].mxu0
        %v987 = vpop.f32.mrb[0].mxu0
        %v988 = vpop.f32.mrb[0].mxu0
        %989 = vdwg.mxu0
        %v990 = vpack.c.bf16 %v985, %v985
        %v991 = vld [vmem:[#allocation8 + $0x8] sm:$0xf]
        %v993 = vsel %vm566, %v990, 0
        %v996 = vsel %vm628, %v991, 0
        %998 = vmatprep.subr.bf16.mxu0 0
        %999 = vmatpush1.bf16.msra.mxu0 %v996
        %1000 = vmatprep.subr.bf16.mxu0 0
        %1001 = vmatpush1.bf16.msra.mxu0 0
        %1002 = vmatprep.subr.bf16.mxu0 0
        %1003 = vmatpush1.bf16.msra.mxu0 0
        %1004 = vmatprep.subr.bf16.mxu0 0
        %1005 = vmatpush1.bf16.msra.mxu0 0
        %1006 = vmatprep.subr.bf16.mxu0 0
        %1007 = vmatpush1.bf16.msra.mxu0 0
        %1008 = vmatprep.subr.bf16.mxu0 0
        %1009 = vmatpush1.bf16.msra.mxu0 0
        %1010 = vmatprep.subr.bf16.mxu0 0
        %1011 = vmatpush1.bf16.msra.mxu0 0
        %1012 = vmatprep.subr.bf16.mxu0 0
        %1013 = vmatpush1.bf16.msra.mxu0 0
        %1014 = vmatprep.subr.bf16.mxu0 0
        %1015 = vmatpush1.bf16.msra.mxu0 0
        %1016 = vmatprep.subr.bf16.mxu0 0
        %1017 = vmatpush1.bf16.msra.mxu0 0
        %1018 = vmatprep.subr.bf16.mxu0 0
        %1019 = vmatpush1.bf16.msra.mxu0 0
        %1020 = vmatprep.subr.bf16.mxu0 0
        %1021 = vmatpush1.bf16.msra.mxu0 0
        %1022 = vmatprep.subr.bf16.mxu0 0
        %1023 = vmatpush1.bf16.msra.mxu0 0
        %1024 = vmatprep.subr.bf16.mxu0 0
        %1025 = vmatpush1.bf16.msra.mxu0 0
        %1026 = vmatprep.subr.bf16.mxu0 0
        %1027 = vmatpush1.bf16.msra.mxu0 0
        %1028 = vmatprep.subr.bf16.mxu0 0
        %1029 = vmatpush1.bf16.msra.mxu0 0
        %1030 = vmatprep.mubr.bf16.mxu0 0
        %1031 = vmatmul.mubr.bf16.gmra.mrb[0].mxu0 %v993
        %v1032 = vpop.f32.mrb[0].mxu0
        %v1033 = vadd.f32 0.0, %v1032
        %v1034 = vpop.f32.mrb[0].mxu0
        %v1035 = vpop.f32.mrb[0].mxu0
        %v1036 = vpop.f32.mrb[0].mxu0
        %1037 = vdwg.mxu0
        %v1038 = vadd.f32 %v875, %v1033
        %1039 = vrot.lane.b32.xlu0 %v560, 104
        %v1040 = vpop.permute.xlu0 %1039
        %1041 = vrot.lane.b32.xlu0 %v561, 72
        %v1042 = vpop.permute.xlu0 %1041
        %v1044 = vsel %vm566, %v1040, 0
        %v1047 = vsel %vm566, %v1042, 0
        %1049 = vmatprep.subr.bf16.mxu0 0
        %1050 = vmatpush1.bf16.xpose.msra.mxu0 %v1047
        %1051 = vmatprep.subr.bf16.mxu0 0
        %1052 = vmatpush1.bf16.xpose.msra.mxu0 0
        %1053 = vmatprep.subr.bf16.mxu0 0
        %1054 = vmatpush1.bf16.xpose.msra.mxu0 0
        %1055 = vmatprep.subr.bf16.mxu0 0
        %1056 = vmatpush1.bf16.xpose.msra.mxu0 0
        %1057 = vmatprep.subr.bf16.mxu0 0
        %1058 = vmatpush1.bf16.xpose.msra.mxu0 0
        %1059 = vmatprep.subr.bf16.mxu0 0
        %1060 = vmatpush1.bf16.xpose.msra.mxu0 0
        %1061 = vmatprep.subr.bf16.mxu0 0
        %1062 = vmatpush1.bf16.xpose.msra.mxu0 0
        %1063 = vmatprep.subr.bf16.mxu0 0
        %1064 = vmatpush1.bf16.xpose.msra.mxu0 0
        %1065 = vmatprep.subr.bf16.mxu0 0
        %1066 = vmatpush1.bf16.xpose.msra.mxu0 0
        %1067 = vmatprep.subr.bf16.mxu0 0
        %1068 = vmatpush1.bf16.xpose.msra.mxu0 0
        %1069 = vmatprep.subr.bf16.mxu0 0
        %1070 = vmatpush1.bf16.xpose.msra.mxu0 0
        %1071 = vmatprep.subr.bf16.mxu0 0
        %1072 = vmatpush1.bf16.xpose.msra.mxu0 0
        %1073 = vmatprep.subr.bf16.mxu0 0
        %1074 = vmatpush1.bf16.xpose.msra.mxu0 0
        %1075 = vmatprep.subr.bf16.mxu0 0
        %1076 = vmatpush1.bf16.xpose.msra.mxu0 0
        %1077 = vmatprep.subr.bf16.mxu0 0
        %1078 = vmatpush1.bf16.xpose.msra.mxu0 0
        %1079 = vmatprep.subr.bf16.mxu0 0
        %1080 = vmatpush1.bf16.xpose.msra.mxu0 0
        %1081 = vmatprep.mubr.bf16.mxu0 0
        %1082 = vmatmul.mubr.bf16.gmra.mrb[0].mxu0 %v1044
        %v1083 = vpop.f32.mrb[0].mxu0
        %v1084 = vadd.f32 0.0, %v1083
        %v1085 = vpop.f32.mrb[0].mxu0
        %v1086 = vpop.f32.mrb[0].mxu0
        %v1087 = vpop.f32.mrb[0].mxu0
        %1088 = vdwg.mxu0
        %v1089 = vsel %vm566, %v1084, -inf
        %1090 = vmax.xlane.f32.xlu0 %v1089
        %v1091 = vpop.xlane.xlu0 %1090
        %v1092 = vsub.f32 %v1084, %v1091
        %v1093 = vmul.f32 %v1092, 1.442695
        %v1094 = vpow.pop %v1093
        %v1095 = vsel %vm566, %v1094, 0.0
        %1096 = vadd.xlane.f32.xlu0 %v1095
        %v1097 = vpop.xlane.xlu0 %1096
        %v1098 = vrcp.pop %v1097
        %v1099 = vmul.f32 %v1094, %v1098
        %v1100 = vpack.c.bf16 %v1099, %v1099
        %1101 = vrot.lane.b32.xlu0 %v562, 104
        %v1102 = vpop.permute.xlu0 %1101
        %v1104 = vsel %vm566, %v1100, 0
        %v1107 = vsel %vm628, %v1102, 0
        %1109 = vmatprep.subr.bf16.mxu0 0
        %1110 = vmatpush1.bf16.msra.mxu0 %v1107
        %1111 = vmatprep.subr.bf16.mxu0 0
        %1112 = vmatpush1.bf16.msra.mxu0 0
        %1113 = vmatprep.subr.bf16.mxu0 0
        %1114 = vmatpush1.bf16.msra.mxu0 0
        %1115 = vmatprep.subr.bf16.mxu0 0
        %1116 = vmatpush1.bf16.msra.mxu0 0
        %1117 = vmatprep.subr.bf16.mxu0 0
        %1118 = vmatpush1.bf16.msra.mxu0 0
        %1119 = vmatprep.subr.bf16.mxu0 0
        %1120 = vmatpush1.bf16.msra.mxu0 0
        %1121 = vmatprep.subr.bf16.mxu0 0
        %1122 = vmatpush1.bf16.msra.mxu0 0
        %1123 = vmatprep.subr.bf16.mxu0 0
        %1124 = vmatpush1.bf16.msra.mxu0 0
        %1125 = vmatprep.subr.bf16.mxu0 0
        %1126 = vmatpush1.bf16.msra.mxu0 0
        %1127 = vmatprep.subr.bf16.mxu0 0
        %1128 = vmatpush1.bf16.msra.mxu0 0
        %1129 = vmatprep.subr.bf16.mxu0 0
        %1130 = vmatpush1.bf16.msra.mxu0 0
        %1131 = vmatprep.subr.bf16.mxu0 0
        %1132 = vmatpush1.bf16.msra.mxu0 0
        %1133 = vmatprep.subr.bf16.mxu0 0
        %1134 = vmatpush1.bf16.msra.mxu0 0
        %1135 = vmatprep.subr.bf16.mxu0 0
        %1136 = vmatpush1.bf16.msra.mxu0 0
        %1137 = vmatprep.subr.bf16.mxu0 0
        %1138 = vmatpush1.bf16.msra.mxu0 0
        %1139 = vmatprep.subr.bf16.mxu0 0
        %1140 = vmatpush1.bf16.msra.mxu0 0
        %1141 = vmatprep.mubr.bf16.mxu0 0
        %1142 = vmatmul.mubr.bf16.gmra.mrb[0].mxu0 %v1104
        %v1143 = vpop.f32.mrb[0].mxu0
        %v1144 = vadd.f32 0.0, %v1143
        %v1145 = vpop.f32.mrb[0].mxu0
        %v1146 = vpop.f32.mrb[0].mxu0
        %v1147 = vpop.f32.mrb[0].mxu0
        %1148 = vdwg.mxu0
        %v1149 = vpack.c.bf16 %v1144, %v1144
        %v1150 = vld [vmem:[#allocation8 + $0xc] sm:$0xf]
        %v1152 = vsel %vm566, %v1149, 0
        %v1155 = vsel %vm628, %v1150, 0
        %1157 = vmatprep.subr.bf16.mxu0 0
        %1158 = vmatpush1.bf16.msra.mxu0 %v1155
        %1159 = vmatprep.subr.bf16.mxu0 0
        %1160 = vmatpush1.bf16.msra.mxu0 0
        %1161 = vmatprep.subr.bf16.mxu0 0
        %1162 = vmatpush1.bf16.msra.mxu0 0
        %1163 = vmatprep.subr.bf16.mxu0 0
        %1164 = vmatpush1.bf16.msra.mxu0 0
        %1165 = vmatprep.subr.bf16.mxu0 0
        %1166 = vmatpush1.bf16.msra.mxu0 0
        %1167 = vmatprep.subr.bf16.mxu0 0
        %1168 = vmatpush1.bf16.msra.mxu0 0
        %1169 = vmatprep.subr.bf16.mxu0 0
        %1170 = vmatpush1.bf16.msra.mxu0 0
        %1171 = vmatprep.subr.bf16.mxu0 0
        %1172 = vmatpush1.bf16.msra.mxu0 0
        %1173 = vmatprep.subr.bf16.mxu0 0
        %1174 = vmatpush1.bf16.msra.mxu0 0
        %1175 = vmatprep.subr.bf16.mxu0 0
        %1176 = vmatpush1.bf16.msra.mxu0 0
        %1177 = vmatprep.subr.bf16.mxu0 0
        %1178 = vmatpush1.bf16.msra.mxu0 0
        %1179 = vmatprep.subr.bf16.mxu0 0
        %1180 = vmatpush1.bf16.msra.mxu0 0
        %1181 = vmatprep.subr.bf16.mxu0 0
        %1182 = vmatpush1.bf16.msra.mxu0 0
        %1183 = vmatprep.subr.bf16.mxu0 0
        %1184 = vmatpush1.bf16.msra.mxu0 0
        %1185 = vmatprep.subr.bf16.mxu0 0
        %1186 = vmatpush1.bf16.msra.mxu0 0
        %1187 = vmatprep.subr.bf16.mxu0 0
        %1188 = vmatpush1.bf16.msra.mxu0 0
        %1189 = vmatprep.mubr.bf16.mxu0 0
        %1190 = vmatmul.mubr.bf16.gmra.mrb[0].mxu0 %v1152
        %v1191 = vpop.f32.mrb[0].mxu0
        %v1192 = vadd.f32 0.0, %v1191
        %v1193 = vpop.f32.mrb[0].mxu0
        %v1194 = vpop.f32.mrb[0].mxu0
        %v1195 = vpop.f32.mrb[0].mxu0
        %1196 = vdwg.mxu0
        %v1197 = vadd.f32 %v1038, %v1192
        %v1198 = vadd.f32 %v434, %v1197
        %v1200 = vlaneseq
        %v1201 = vshrl.u32 %v1200, 7
        %v1202 = vsub.s32 0, %v1201
        %v1203 = vrot.slane %v433, %v1202
        %v1205 = vadd.f32 %v1198, %v1203
        %v1206 = vsel %vm462, %v1205, 0.0
        %1207 = vadd.xlane.f32.xlu0 %v1206
        %v1208 = vpop.xlane.xlu0 %1207
        %v1209 = vrcp.pop 32.0
        %v1210 = vmul.f32 %v1208, %v1209
        %v1211 = vsub.f32 %v1205, %v1210
        %v1212 = vmul.f32 %v1211, %v1211
        %v1213 = vsel %vm462, %v1212, 0.0
        %1214 = vadd.xlane.f32.xlu0 %v1213
        %v1215 = vpop.xlane.xlu0 %1214
        %v1216 = vmul.f32 %v1215, %v1209
        %v1217 = vadd.f32 %v1216, 1e-05
        %v1218 = vrsqrt.pop %v1217
        %v1219 = vmul.f32 %v1211, %v1218
        %v1221 = vlaneseq
        %v1222 = vshrl.u32 %v1221, 7
        %v1223 = vsub.s32 0, %v1222
        %v1224 = vrot.slane %v435, %v1223
        %v1226 = vmul.f32 %v1219, %v1224
        %v1228 = vlaneseq
        %v1229 = vshrl.u32 %v1228, 7
        %v1230 = vsub.s32 0, %v1229
        %v1231 = vrot.slane %v436, %v1230
        %v1233 = vadd.f32 %v1226, %v1231
        %1234 = vst.msk [vmem:[%s426] sm:$0xff] %vm462, %v1233
        %s1235 = sand.u32 %s242, 1
        %s1236 = scalar_lea.sflag [#allocation4], %s1235
        %s1237 = sand.u32 %s242, 1
        %s1238 = smul.addr %s1237, 8
        %s1239 = scalar_lea.vmem [#allocation10], %s1238
        // Predicated region
        $region73: #{tpu_custom_call.1} parent=55 // pred_check
          %p1240 = pneg %p252
        $region74: #{tpu_custom_call.1} parent=55 // pred_check_branch
          %1242 = sbr.rel (%p1240) target = $region76
        $region75: #{tpu_custom_call.1} parent=55 // pred_region
          %s1244 = ssub.s32 128, 128
          %1245 = vsyncadd %s1236, %s1244
          %s1246 = smul.addr %s30, 128
          %s1247 = scalar_lea.hbm %s9, %s1246
          %s1249 = sshll.u32 %s1239, 4
          %s1250 = int_to_ptr.vmem [resolvable:$true] %s1249
          %1252 = dma.vmem_to_hbm [thread:$0]  %s1250, 128, %s1247, %s1236
        $region76: #{tpu_custom_call.1} parent=55 // pred_fallthru
          _
      $region56: #{tpu_custom_call.1} parent=5 // pred_fallthru
        _
      %p1253 = scmp.le.s32.totalorder 2, %s25
      // Predicated region
      $region77: #{tpu_custom_call.1} parent=5 // pred_check
        %p1254 = pneg %p1253
      $region78: #{tpu_custom_call.1} parent=5 // pred_check_branch
        %1256 = sbr.rel (%p1254) target = $region80
      $region79: #{tpu_custom_call.1} parent=5 // pred_region
        %s1257 = ssub.s32 %s25, 2
        // Predicated region
        $region81: #{tpu_custom_call.1} parent=79 // pred_check
          %p1258 = pneg %p258
        $region82: #{tpu_custom_call.1} parent=79 // pred_check_branch
          %1260 = sbr.rel (%p1258) target = $region84
        $region83: #{tpu_custom_call.1} parent=79 // pred_region
          %s1261 = sand.u32 %s243, 1
          %s1262 = scalar_lea.sflag [#allocation4], %s1261
          %s1263 = sand.u32 %s243, 1
          %s1264 = smul.addr %s1263, 8
          %s1265 = scalar_lea.vmem [#allocation10], %s1264
          %1266 = dma.done %s1262, 128
        $region84: #{tpu_custom_call.1} parent=79 // pred_fallthru
          _
      $region80: #{tpu_custom_call.1} parent=5 // pred_fallthru
        _
    $region6: #{tpu_custom_call.1} parent=1 // loop_footer
      %s29 = sadd.s32 1, %s25
    $region7: #{tpu_custom_call.1} parent=1 // loop_footer_branch
      %24 = sbr.rel target = $region3
    $region8: #{tpu_custom_call.1} parent=1 // loop_exit
      _
    %1267 = vsyncpa [#allocation3], 1
    %s1268 = scalar_lea.sflag [#allocation3], 1
    %1269 = vsyncpa %s1268, 1
    %1270 = vsyncpa [#allocation6], 1
    %s1271 = scalar_lea.sflag [#allocation6], 1
    %1272 = vsyncpa %s1271, 1
    %1273 = vsyncpa [#allocation9], 1
    %1274 = vsyncpa [#allocation4], 1
    %s1275 = scalar_lea.sflag [#allocation4], 1
    %1276 = vsyncpa %s1275, 1

</llo_original>
